<compile_context>
chip_gen: v7x
topology: tpu7x:2x2x1
jax: 0.10.0
libtpu: 0.0.40
codegen_flags: <defaults>
</compile_context>

<pallas_src>
import jax
import jax.numpy as jnp
from jax import lax
from jax.experimental import pallas as pl
from jax.experimental.pallas import tpu as pltpu

_LANES = 128


def _make_kernel(*, D, N, td, tn, d_tiles, n_tiles):
    """Kernel specialized on the static tiling parameters."""
    need_n_mask = (n_tiles * tn) != N
    need_d_mask = (d_tiles * td) != D
    multi_d = d_tiles > 1
    lane_groups = tn // _LANES

    def kernel(anchor_ref, other_ref, y_ref, out_ref, dsq_ref):
        # grid = (b_tiles, n_tiles, d_tiles); the last two axes are reductions.
        k = pl.program_id(1)   # N tile
        d = pl.program_id(2)   # D tile (innermost)
        tb = y_ref.shape[0]

        @pl.when((k == 0) & (d == 0))
        def _init_out():
            out_ref[...] = jnp.zeros_like(out_ref)

        # Upcast so squared distances / loss accumulate in f32 even for bf16.
        a = anchor_ref[...].astype(jnp.float32)
        o = other_ref[...].astype(jnp.float32)
        diff = a - o
        sq = diff * diff                                    # [tb, td, tn]
        if need_d_mask:
            # Last D block extends past D: zero the out-of-bounds sublanes
            # (Pallas fills OOB loads with unspecified values).
            drow = d * td + lax.broadcasted_iota(jnp.int32, (td, tn), 0)
            sq = jnp.where((drow < D)[None, :, :], sq, 0.0)
        partial_dsq = jnp.sum(sq, axis=1)                   # [tb, tn]

        def _finalize(dist_sq):
            dist = jnp.sqrt(dist_sq)                        # EUP
            err = dist - y_ref[...].astype(jnp.float32)     # [tb, tn]
            err_sq = err * err
            if need_n_mask:
                # Last N block extends past N: zero the garbage lanes.
                col = k * tn + lax.broadcasted_iota(jnp.int32, (tb, tn), 1)
                err_sq = jnp.where(col < N, err_sq, 0.0)
            # Fold lane groups with static 128-wide slices (VPU adds only);
            # the single cross-lane reduce is deferred to the wrapper.
            partial = err_sq[:, 0:_LANES]
            for g in range(1, lane_groups):
                partial = partial + err_sq[:, g * _LANES:(g + 1) * _LANES]
            out_ref[...] += partial                         # [tb, 128]

        if multi_d:
            @pl.when(d == 0)
            def _init_dsq():
                dsq_ref[...] = jnp.zeros_like(dsq_ref)

            dsq_ref[...] += partial_dsq

            @pl.when(d == d_tiles - 1)
            def _finish():
                _finalize(dsq_ref[...])
        else:
            _finalize(partial_dsq)

    return kernel


def _tpu_budgets():
    """Generation-aware VMEM budgets (v7x: 64 MiB/TC; v5e/v6e: 128 MiB)."""
    try:
        info = pltpu.get_tpu_info()
        vmem_cap = int(getattr(info, "vmem_capacity_bytes", 64 << 20))
    except Exception:  # off-TPU / older jax: assume the smallest (v7x) VMEM
        vmem_cap = 64 << 20
    if vmem_cap <= (64 << 20):          # v7x-class
        return 14 << 20, 44 << 20       # (tile double-buffer budget, scoped cap)
    return 24 << 20, 64 << 20           # v5e / v6e


def _choose_tiles(B, D, N, itemsize, tile_budget):
    n128 = pl.cdiv(max(N, 1), _LANES) * _LANES
    # Batch tile: multiple of 8; keep >= 2 B-tiles whenever B > 8 so the
    # "parallel" B axis can feed both TensorCores on v7x.
    if B > 8:
        tb = min(32, max(8, ((B // 2) // 8) * 8))
    else:
        tb = 8
    # TODO(synk): when B <= 8 on v7x one TensorCore idles; a CORE_PARALLEL
    # split of the N axis into two partial (B,128) outputs would fix that.
    tn = min(2048, n128)
    td = D

    def footprint(tb_, tn_, td_):
        step = (2 * tb_ * td_ * tn_ + tb_ * tn_) * itemsize     # per-step inputs
        return 2 * step + tb_ * tn_ * 4 + tb_ * _LANES * 4      # dbl-buf + scratch + out

    while footprint(tb, tn, td) > tile_budget:
        if tn > 512:
            tn = max(_LANES, ((tn // 2) // _LANES) * _LANES)
        elif tb > 8:
            tb -= 8
        elif td > 8:
            # Large-D path: split D over the innermost grid axis instead of
            # collapsing tn (keeps contiguous HBM runs lane-dense).
            td = max(8, ((td // 2) + 7) // 8 * 8)
        elif tn > _LANES:
            tn = max(_LANES, ((tn // 2) // _LANES) * _LANES)
        else:
            break
    return tb, tn, td


def rms_euclidian_loss(emb_anchor, emb_other, y):
    """Pallas TPU implementation of RMSEuclidianLoss.forward.

    emb_anchor, emb_other: [B, D, N]; y: [B, N]. Returns loss of shape [B].
    """
    assert emb_anchor.shape == emb_other.shape
    B, D, N = emb_anchor.shape
    assert y.shape == (B, N)
    orig_dtype = emb_anchor.dtype
    itemsize = jnp.dtype(orig_dtype).itemsize

    tile_budget, vmem_limit_cap = _tpu_budgets()
    tb, tn, td = _choose_tiles(B, D, N, itemsize, tile_budget)

    b_tiles = pl.cdiv(B, tb)
    n_tiles = pl.cdiv(N, tn)
    d_tiles = pl.cdiv(D, td)
    grid = (b_tiles, n_tiles, d_tiles)

    kernel = _make_kernel(D=D, N=N, td=td, tn=tn, d_tiles=d_tiles, n_tiles=n_tiles)

    # Scoped-VMEM limit: double-buffered input tiles + dist_sq scratch +
    # resident out block + headroom for the in-kernel f32 upcast intermediates.
    step_bytes = (2 * tb * td * tn + tb * tn) * itemsize
    est = 2 * step_bytes + tb * tn * 4 + 2 * tb * _LANES * 4 + 3 * tb * td * tn * 4
    vmem_limit = int(min(vmem_limit_cap, max(2 * est, 8 << 20)))

    cost = pl.CostEstimate(
        flops=3 * B * D * N + 4 * B * N,
        transcendentals=B * N,                          # sqrt
        bytes_accessed=(2 * B * D * N + B * N) * itemsize + b_tiles * tb * _LANES * 4,
    )

    out = pl.pallas_call(
        kernel,
        out_shape=jax.ShapeDtypeStruct((b_tiles * tb, _LANES), jnp.float32),
        grid=grid,
        in_specs=[
            pl.BlockSpec((tb, td, tn), lambda i, k, d: (i, d, k)),
            pl.BlockSpec((tb, td, tn), lambda i, k, d: (i, d, k)),
            pl.BlockSpec((tb, tn), lambda i, k, d: (i, k)),
        ],
        out_specs=pl.BlockSpec((tb, _LANES), lambda i, k, d: (i, 0)),
        scratch_shapes=[pltpu.VMEM((tb, tn), jnp.float32)],
        compiler_params=pltpu.CompilerParams(
            dimension_semantics=("parallel", "arbitrary", "arbitrary"),
            vmem_limit_bytes=vmem_limit,
        ),
        cost_estimate=cost,
    )(emb_anchor, emb_other, y)

    # out[:B] holds f32 per-lane partial sums; one tiny cross-lane reduce in
    # the wrapper.  Final cast matches the PyTorch output dtype (accumulation
    # itself was done in f32).
    loss = jnp.sum(out[:B], axis=-1)
    return loss.astype(orig_dtype)


def _reference(emb_anchor, emb_other, y):
    diff = emb_anchor - emb_other
    dist = jnp.sqrt(jnp.sum(diff ** 2, axis=1))
    return jnp.sum((dist - y) ** 2, axis=1)


if __name__ == "__main__":
    base_key = jax.random.PRNGKey(0)

    def run_case(B, D, N, dtype=jnp.float32):
        key = jax.random.fold_in(base_key, B * 1000003 + D * 1009 + N)
        k1, k2, k3 = jax.random.split(key, 3)
        emb_anchor = jax.random.normal(k1, (B, D, N), dtype=dtype)
        emb_other = jax.random.normal(k2, (B, D, N), dtype=dtype)
        y = jax.random.uniform(k3, (B, N), dtype=dtype)

        loss = jax.block_until_ready(rms_euclidian_loss(emb_anchor, emb_other, y))
        ref = _reference(emb_anchor.astype(jnp.float32),
                         emb_other.astype(jnp.float32),
                         y.astype(jnp.float32))
        assert loss.shape == (B,)
        assert jnp.allclose(loss.astype(jnp.float32), ref, rtol=2e-4, atol=1e-4), (loss, ref)

    # Aligned, multi-B-tile path: grid (2, 1, 1); both TensorCores fed on v7x.
    run_case(B=16, D=32, N=1024)
    # Tiny original shape: exercises the no-pad B/N tail handling (blocks
    # extend past B=2 and N=16, garbage lanes masked, garbage rows sliced).
    run_case(B=2, D=32, N=16)
    # Unaligned N + odd D inside a single D block: N-tail lane mask.
    run_case(B=4, D=100, N=200)
    # Large-D path: D split across the innermost grid axis + D-tail mask.
    run_case(B=8, D=1000, N=384)

    print("KERNEL_OK")
</pallas_src>

<mosaic_0001>
module attributes {stable_mosaic.version = 11 : i64} {
  func.func @kernel(%arg0: i32, %arg1: i32, %arg2: i32, %arg3: memref<8x32x1024xf32, #tpu.memory_space<vmem>>, %arg4: memref<8x32x1024xf32, #tpu.memory_space<vmem>>, %arg5: memref<8x1024xf32, #tpu.memory_space<vmem>>, %arg6: memref<8x128xf32, #tpu.memory_space<vmem>>, %arg7: memref<8x1024xf32, #tpu.memory_space<vmem>>) attributes {dimension_semantics = [#tpu.dimension_semantics<parallel>, #tpu.dimension_semantics<arbitrary>, #tpu.dimension_semantics<arbitrary>], iteration_bounds = array<i64: 2, 1, 1>, scalar_prefetch = 0 : i64, scratch_operands = 1 : i64, tpu.core_type = #tpu.core_type<tc>, window_params = [{transform_indices = @transform_0, window_bounds = array<i64: 8, 32, 1024>}, {transform_indices = @transform_1, window_bounds = array<i64: 8, 32, 1024>}, {transform_indices = @transform_2, window_bounds = array<i64: 8, 1024>}, {transform_indices = @transform_3, window_bounds = array<i64: 8, 128>}]} {
    %c0_i32 = arith.constant 0 : i32
    %0 = arith.cmpi eq, %arg1, %c0_i32 : i32
    %c0_i32_0 = arith.constant 0 : i32
    %1 = arith.cmpi eq, %arg2, %c0_i32_0 : i32
    %2 = arith.andi %0, %1 : i1
    %3 = arith.extui %2 : i1 to i32
    %c0_i32_1 = arith.constant 0 : i32
    %4 = arith.cmpi ne, %3, %c0_i32_1 : i32
    scf.if %4 {
      %cst_13 = arith.constant 0.000000e+00 : f32
      %32 = vector.broadcast %cst_13 : f32 to vector<8x128xf32>
      %c0_14 = arith.constant 0 : index
      %c0_15 = arith.constant 0 : index
      %33 = vector.load %arg6[%c0_14, %c0_15] : memref<8x128xf32, #tpu.memory_space<vmem>>, vector<8x128xf32>
      tpu.vector_store %arg6[%c0_14, %c0_15], %32 {strides = array<i32>} : memref<8x128xf32, #tpu.memory_space<vmem>>, vector<8x128xf32>,
    } else {
    }
    %c0 = arith.constant 0 : index
    %c0_2 = arith.constant 0 : index
    %c0_3 = arith.constant 0 : index
    %5 = vector.load %arg3[%c0, %c0_2, %c0_3] : memref<8x32x1024xf32, #tpu.memory_space<vmem>>, vector<8x32x1024xf32>
    %c0_4 = arith.constant 0 : index
    %c0_5 = arith.constant 0 : index
    %c0_6 = arith.constant 0 : index
    %6 = vector.load %arg4[%c0_4, %c0_5, %c0_6] : memref<8x32x1024xf32, #tpu.memory_space<vmem>>, vector<8x32x1024xf32>
    %7 = arith.subf %5, %6 : vector<8x32x1024xf32>
    %8 = arith.mulf %7, %7 : vector<8x32x1024xf32>
    %cst = arith.constant dense<0.000000e+00> : vector<8x1024xf32>
    %9 = vector.multi_reduction <add>, %8, %cst [1] : vector<8x32x1024xf32> to vector<8x1024xf32>
    %10 = math.sqrt %9 : vector<8x1024xf32>
    %c0_7 = arith.constant 0 : index
    %c0_8 = arith.constant 0 : index
    %11 = vector.load %arg5[%c0_7, %c0_8] : memref<8x1024xf32, #tpu.memory_space<vmem>>, vector<8x1024xf32>
    %12 = arith.subf %10, %11 : vector<8x1024xf32>
    %13 = arith.mulf %12, %12 : vector<8x1024xf32>
    %14 = vector.extract_strided_slice %13 {offsets = [0, 0], sizes = [8, 128], strides = [1, 1]} : vector<8x1024xf32> to vector<8x128xf32>
    %15 = vector.extract_strided_slice %13 {offsets = [0, 128], sizes = [8, 128], strides = [1, 1]} : vector<8x1024xf32> to vector<8x128xf32>
    %16 = arith.addf %14, %15 : vector<8x128xf32>
    %17 = vector.extract_strided_slice %13 {offsets = [0, 256], sizes = [8, 128], strides = [1, 1]} : vector<8x1024xf32> to vector<8x128xf32>
    %18 = arith.addf %16, %17 : vector<8x128xf32>
    %19 = vector.extract_strided_slice %13 {offsets = [0, 384], sizes = [8, 128], strides = [1, 1]} : vector<8x1024xf32> to vector<8x128xf32>
    %20 = arith.addf %18, %19 : vector<8x128xf32>
    %21 = vector.extract_strided_slice %13 {offsets = [0, 512], sizes = [8, 128], strides = [1, 1]} : vector<8x1024xf32> to vector<8x128xf32>
    %22 = arith.addf %20, %21 : vector<8x128xf32>
    %23 = vector.extract_strided_slice %13 {offsets = [0, 640], sizes = [8, 128], strides = [1, 1]} : vector<8x1024xf32> to vector<8x128xf32>
    %24 = arith.addf %22, %23 : vector<8x128xf32>
    %25 = vector.extract_strided_slice %13 {offsets = [0, 768], sizes = [8, 128], strides = [1, 1]} : vector<8x1024xf32> to vector<8x128xf32>
    %26 = arith.addf %24, %25 : vector<8x128xf32>
    %27 = vector.extract_strided_slice %13 {offsets = [0, 896], sizes = [8, 128], strides = [1, 1]} : vector<8x1024xf32> to vector<8x128xf32>
    %28 = arith.addf %26, %27 : vector<8x128xf32>
    %c0_9 = arith.constant 0 : index
    %c0_10 = arith.constant 0 : index
    %29 = vector.load %arg6[%c0_9, %c0_10] : memref<8x128xf32, #tpu.memory_space<vmem>>, vector<8x128xf32>
    %30 = arith.addf %29, %28 : vector<8x128xf32>
    %c0_11 = arith.constant 0 : index
    %c0_12 = arith.constant 0 : index
    %31 = vector.load %arg6[%c0_11, %c0_12] : memref<8x128xf32, #tpu.memory_space<vmem>>, vector<8x128xf32>
    tpu.vector_store %arg6[%c0_11, %c0_12], %30 {strides = array<i32>} : memref<8x128xf32, #tpu.memory_space<vmem>>, vector<8x128xf32>,
    return
  }
  func.func @transform_0(%arg0: i32, %arg1: i32, %arg2: i32) -> (i32, i32, i32) {
    %c0_i32 = arith.constant 0 : i32
    return %arg0, %arg2, %arg1 : i32, i32, i32
  }
  func.func @transform_1(%arg0: i32, %arg1: i32, %arg2: i32) -> (i32, i32, i32) {
    %c0_i32 = arith.constant 0 : i32
    return %arg0, %arg2, %arg1 : i32, i32, i32
  }
  func.func @transform_2(%arg0: i32, %arg1: i32, %arg2: i32) -> (i32, i32) {
    %c0_i32 = arith.constant 0 : i32
    return %arg0, %arg1 : i32, i32
  }
  func.func @transform_3(%arg0: i32, %arg1: i32, %arg2: i32) -> (i32, i32) {
    %c0_i32 = arith.constant 0 : i32
    %c0_i32_0 = arith.constant 0 : i32
    return %arg0, %c0_i32 : i32, i32
  }
}

</mosaic_0001>

<llo_original>
// kernel: tpu_custom_call.1
$region0: #{tpu_custom_call.1}
  #allocation0 [shape = 'u32[]', space=smem, size = 0x4, offset = 0x4, fixed_abs, tag = 'smem constant byte address 0x4 - core index']
  #allocation1 [shape = 'u32[144,128]{1,0:T(1,128)}', space=vmem, size = 0x12000, scoped, tag = 'internal scratch']
  #allocation2 [shape = 'f32[8,1024]{1,0:T(8,128)}', space=vmem, size = 0x8000, scoped, tag = 'scratch operand']
  %s0 = inlined_call_operand.hbm [shape: f32[16,32,1024], index: 0, kind: input, shape index: {}]
  %s1 = inlined_call_operand.hbm [shape: f32[16,32,1024], index: 1, kind: input, shape index: {}]
  %s2 = inlined_call_operand.hbm [shape: f32[16,1024], index: 2, kind: input, shape index: {}]
  %s3 = inlined_call_operand.hbm [shape: f32[16,128], index: 3, kind: output, shape index: {}]
  %s4 = sld [smem:[#allocation0]]
  $region61: #{tpu_custom_call.1} parent=0
    _
  %s6 = ssub.s32 1, %s4
  %s7 = scalar_select 0, %s6, %s4
  $region1: #{tpu_custom_call.1} parent=0
    #allocation3 [shape = 'u8[2097152]{0}', space=vmem, size = 0x200000, scoped, tag = 'input window, operand 0']
    #allocation4 [shape = 's32[2]{0}', space=sflag, size = 0x8, scoped, tag = 'scoped memory for tpu_custom_call.1']
    #allocation5 [shape = 's32[2]{0}', space=sflag, size = 0x8, scoped, tag = 'scoped memory for tpu_custom_call.1']
    #allocation6 [shape = 'u8[2097152]{0}', space=vmem, size = 0x200000, scoped, tag = 'input window, operand 1']
    #allocation7 [shape = 's32[2]{0}', space=sflag, size = 0x8, scoped, tag = 'scoped memory for tpu_custom_call.1']
    #allocation8 [shape = 'u8[65536]{0}', space=vmem, size = 0x10000, scoped, tag = 'input window, operand 2']
    #allocation9 [shape = 'u8[8192]{0}', space=vmem, size = 0x2000, scoped, tag = 'output window, operand 0']
    %8 = vsyncpa [#allocation4], 0
    %s9 = scalar_lea.sflag [#allocation4], 1
    %10 = vsyncpa %s9, 0
    %11 = vsyncpa [#allocation7], 0
    %s12 = scalar_lea.sflag [#allocation7], 1
    %13 = vsyncpa %s12, 0
    %14 = vsyncpa [#allocation5], 0
    %s15 = scalar_lea.sflag [#allocation5], 1
    %16 = vsyncpa %s15, 0
    loop: start=0, step=1, limit=4
    $region2: #{tpu_custom_call.1} parent=1 // loop_pre_header
      _
    $region3: #{tpu_custom_call.1} parent=1 // loop_header
      %s18 = sphi 0, %s22
      %p19 = scmp.ge.s32.totalorder %s18, 4
      %s25 = sphi 0, %s44
      %s26 = sphi 0, %s40
      %s27 = sphi 0, %s36
      %s28 = sphi 0, %s25
      %s29 = sphi 0, %s26
      %s30 = sphi 0, %s27
      %s31 = sphi 0, %s28
      %s32 = sphi 0, %s29
      %s33 = sphi 0, %s30
      %s51 = sphi 0, %s53
      %s54 = sphi 0, %s51
      %s55 = sphi 0, %s54
      %s71 = sphi 0, %s55
      %s81 = sphi 0, %s83
      %s84 = sphi 0, %s81
      %s85 = sphi 0, %s84
      %s101 = sphi 0, %s85
      %s109 = sphi 0, %s111
      %s112 = sphi 0, %s109
      %s113 = sphi 0, %s112
      %s129 = sphi 0, %s113
      %s135 = sphi 0, %s137
      %s138 = sphi 0, %s135
      %s139 = sphi 0, %s138
      %s155 = sphi 0, %s139
    $region4: #{tpu_custom_call.1} parent=1 // loop_header_branch
      %21 = sbr.rel (%p19) target = $region8
    $region5: #{tpu_custom_call.1} parent=1 // loop_body
      %s23 = ssub.s32 %s18, 1
      %s24 = ssub.s32 %s18, 2
      %s34 = sadd.s32 1, %s27
      %p35 = scmp.ge.s32.totalorder %s34, 1
      %s36 = scalar_select %p35, 0, %s34
      %s37 = sadd.s32 1, %s26
      %s38 = scalar_select %p35, %s37, %s26
      %p39 = scmp.ge.s32.totalorder %s38, 1
      %s40 = scalar_select %p39, 0, %s38
      %s41 = sadd.s32 1, %s25
      %s42 = scalar_select %p39, %s41, %s25
      %p43 = scmp.ge.s32.totalorder %s42, 2
      %s44 = scalar_select %p43, 0, %s42
      %s45 = ssub.s32 %s25, %s44
      %s46 = ssub.s32 %s27, %s36
      %s47 = sor.u32 %s45, %s46
      %s48 = ssub.s32 %s26, %s40
      %s49 = sor.u32 %s47, %s48
      %p50 = scmp.eq.s32.totalorder %s49, 0
      %s52 = sadd.s32 %s51, 1
      %s53 = scalar_select %p50, %s51, %s52
      %p56 = pneg %p50
      %p57 = scmp.eq.s32.totalorder %s18, 1
      %p58 = por %p56, %p57
      %p59 = scmp.ne.s32.totalorder %s51, %s54
      %p60 = scmp.eq.s32.totalorder %s18, 0
      %p61 = por %p59, %p60
      %p62 = scmp.ne.s32.totalorder %s51, %s54
      %p63 = scmp.eq.s32.totalorder %s23, 1
      %p64 = por %p62, %p63
      %p65 = scmp.ne.s32.totalorder %s54, %s55
      %p66 = scmp.eq.s32.totalorder %s23, 0
      %p67 = por %p65, %p66
      %p68 = scmp.ne.s32.totalorder %s54, %s55
      %p69 = scmp.eq.s32.totalorder %s24, 1
      %p70 = por %p68, %p69
      %p72 = scmp.ne.s32.totalorder %s55, %s71
      %p73 = scmp.eq.s32.totalorder %s24, 0
      %p74 = por %p72, %p73
      %s75 = ssub.s32 %s25, %s44
      %s76 = ssub.s32 %s27, %s36
      %s77 = sor.u32 %s75, %s76
      %s78 = ssub.s32 %s26, %s40
      %s79 = sor.u32 %s77, %s78
      %p80 = scmp.eq.s32.totalorder %s79, 0
      %s82 = sadd.s32 %s81, 1
      %s83 = scalar_select %p80, %s81, %s82
      %p86 = pneg %p80
      %p87 = scmp.eq.s32.totalorder %s18, 1
      %p88 = por %p86, %p87
      %p89 = scmp.ne.s32.totalorder %s81, %s84
      %p90 = scmp.eq.s32.totalorder %s18, 0
      %p91 = por %p89, %p90
      %p92 = scmp.ne.s32.totalorder %s81, %s84
      %p93 = scmp.eq.s32.totalorder %s23, 1
      %p94 = por %p92, %p93
      %p95 = scmp.ne.s32.totalorder %s84, %s85
      %p96 = scmp.eq.s32.totalorder %s23, 0
      %p97 = por %p95, %p96
      %p98 = scmp.ne.s32.totalorder %s84, %s85
      %p99 = scmp.eq.s32.totalorder %s24, 1
      %p100 = por %p98, %p99
      %p102 = scmp.ne.s32.totalorder %s85, %s101
      %p103 = scmp.eq.s32.totalorder %s24, 0
      %p104 = por %p102, %p103
      %s105 = ssub.s32 %s25, %s44
      %s106 = ssub.s32 %s26, %s40
      %s107 = sor.u32 %s105, %s106
      %p108 = scmp.eq.s32.totalorder %s107, 0
      %s110 = sadd.s32 %s109, 1
      %s111 = scalar_select %p108, %s109, %s110
      %p114 = pneg %p108
      %p115 = scmp.eq.s32.totalorder %s18, 1
      %p116 = por %p114, %p115
      %p117 = scmp.ne.s32.totalorder %s109, %s112
      %p118 = scmp.eq.s32.totalorder %s18, 0
      %p119 = por %p117, %p118
      %p120 = scmp.ne.s32.totalorder %s109, %s112
      %p121 = scmp.eq.s32.totalorder %s23, 1
      %p122 = por %p120, %p121
      %p123 = scmp.ne.s32.totalorder %s112, %s113
      %p124 = scmp.eq.s32.totalorder %s23, 0
      %p125 = por %p123, %p124
      %p126 = scmp.ne.s32.totalorder %s112, %s113
      %p127 = scmp.eq.s32.totalorder %s24, 1
      %p128 = por %p126, %p127
      %p130 = scmp.ne.s32.totalorder %s113, %s129
      %p131 = scmp.eq.s32.totalorder %s24, 0
      %p132 = por %p130, %p131
      %s133 = ssub.s32 %s25, %s44
      %p134 = scmp.eq.s32.totalorder %s133, 0
      %s136 = sadd.s32 %s135, 1
      %s137 = scalar_select %p134, %s135, %s136
      %p140 = pneg %p134
      %p141 = scmp.eq.s32.totalorder %s18, 1
      %p142 = por %p140, %p141
      %p143 = scmp.ne.s32.totalorder %s135, %s138
      %p144 = scmp.eq.s32.totalorder %s18, 0
      %p145 = por %p143, %p144
      %p146 = scmp.ne.s32.totalorder %s135, %s138
      %p147 = scmp.eq.s32.totalorder %s23, 1
      %p148 = por %p146, %p147
      %p149 = scmp.ne.s32.totalorder %s138, %s139
      %p150 = scmp.eq.s32.totalorder %s23, 0
      %p151 = por %p149, %p150
      %p152 = scmp.ne.s32.totalorder %s138, %s139
      %p153 = scmp.eq.s32.totalorder %s24, 1
      %p154 = por %p152, %p153
      %p156 = scmp.ne.s32.totalorder %s139, %s155
      %p157 = scmp.eq.s32.totalorder %s24, 0
      %p158 = por %p156, %p157
      %p159 = scmp.le.s32.totalorder 1, %s18
      %p160 = scmp.lt.s32.totalorder %s18, 3
      %p161 = pnand %p159, %p160
      %p162 = pneg %p161
      // Predicated region
      $region9: #{tpu_custom_call.1} parent=5 // pred_check
        _
      $region10: #{tpu_custom_call.1} parent=5 // pred_check_branch
        %164 = sbr.rel (%p161) target = $region12
      $region11: #{tpu_custom_call.1} parent=5 // pred_region
        %s165 = ssub.s32 %s18, 1
      $region12: #{tpu_custom_call.1} parent=5 // pred_fallthru
        _
      %p166 = scmp.lt.s32.totalorder %s18, 2
      // Predicated region
      $region13: #{tpu_custom_call.1} parent=5 // pred_check
        %p167 = pneg %p166
      $region14: #{tpu_custom_call.1} parent=5 // pred_check_branch
        %169 = sbr.rel (%p167) target = $region16
      $region15: #{tpu_custom_call.1} parent=5 // pred_region
        // Predicated region
        $region17: #{tpu_custom_call.1} parent=15 // pred_check
          %p170 = pneg %p61
        $region18: #{tpu_custom_call.1} parent=15 // pred_check_branch
          %172 = sbr.rel (%p170) target = $region20
        $region19: #{tpu_custom_call.1} parent=15 // pred_region
          %s173 = sand.u32 %s51, 1
          %s174 = scalar_lea.sflag [#allocation4], %s173
          %s175 = sand.u32 %s51, 1
          %s176 = smul.addr %s175, 2048
          %s177 = scalar_lea.vmem [#allocation3], %s176
          %s178 = smul.u32 8, %s25
          %s179 = smul.u32 4, %s27
          %s180 = smul.u32 8, %s26
          %s182 = ssub.s32 32768, 32768
          %183 = vsyncadd %s174, %s182
          %s184 = smul.addr %s179, 8
          %s185 = sadd.s32 %s180, %s184
          %s186 = smul.addr %s178, 32
          %s187 = sadd.s32 %s185, %s186
          %s188 = smul.addr %s187, 128
          %s189 = scalar_lea.hbm %s0, %s188
          %s190 = sshll.u32 %s177, 4
          %s191 = int_to_ptr.vmem [resolvable:$true] %s190
          %196 = dma.hbm_to_vmem [thread:$0]  %s189, 32768, %s191, %s174, 1024, 1024, 64
        $region20: #{tpu_custom_call.1} parent=15 // pred_fallthru
          _
        // Predicated region
        $region21: #{tpu_custom_call.1} parent=15 // pred_check
          %p197 = pneg %p91
        $region22: #{tpu_custom_call.1} parent=15 // pred_check_branch
          %199 = sbr.rel (%p197) target = $region24
        $region23: #{tpu_custom_call.1} parent=15 // pred_region
          %s200 = sand.u32 %s18, 1
          %s201 = scalar_lea.sflag [#allocation7], %s200
          %s202 = sand.u32 %s81, 1
          %s203 = smul.addr %s202, 2048
          %s204 = scalar_lea.vmem [#allocation6], %s203
          %s205 = smul.u32 8, %s25
          %s206 = smul.u32 4, %s27
          %s207 = smul.u32 8, %s26
          %s209 = ssub.s32 32768, 32768
          %210 = vsyncadd %s201, %s209
          %s211 = smul.addr %s206, 8
          %s212 = sadd.s32 %s207, %s211
          %s213 = smul.addr %s205, 32
          %s214 = sadd.s32 %s212, %s213
          %s215 = smul.addr %s214, 128
          %s216 = scalar_lea.hbm %s1, %s215
          %s217 = sshll.u32 %s204, 4
          %s218 = int_to_ptr.vmem [resolvable:$true] %s217
          %223 = dma.hbm_to_vmem [thread:$0]  %s216, 32768, %s218, %s201, 1024, 1024, 64
        $region24: #{tpu_custom_call.1} parent=15 // pred_fallthru
          _
        // Predicated region
        $region25: #{tpu_custom_call.1} parent=15 // pred_check
          %p224 = pneg %p119
        $region26: #{tpu_custom_call.1} parent=15 // pred_check_branch
          %226 = sbr.rel (%p224) target = $region28
        $region27: #{tpu_custom_call.1} parent=15 // pred_region
          %s227 = sand.u32 %s18, 1
          %s228 = scalar_lea.sflag [#allocation7], %s227
          %s229 = sand.u32 %s109, 1
          %s230 = smul.addr %s229, 64
          %s231 = scalar_lea.vmem [#allocation8], %s230
          %s232 = smul.u32 8, %s26
          %s234 = ssub.s32 1024, 1024
          %235 = vsyncadd %s228, %s234
          %s236 = smul.addr %s25, 8
          %s237 = sadd.s32 %s232, %s236
          %s238 = smul.addr %s237, 128
          %s239 = scalar_lea.hbm %s2, %s238
          %s241 = sshll.u32 %s231, 4
          %s242 = int_to_ptr.vmem [resolvable:$true] %s241
          %244 = dma.hbm_to_vmem [thread:$0]  %s239, 1024, %s242, %s228
        $region28: #{tpu_custom_call.1} parent=15 // pred_fallthru
          _
      $region16: #{tpu_custom_call.1} parent=5 // pred_fallthru
        _
      %p245 = scmp.le.s32.totalorder 1, %s18
      %p246 = scmp.lt.s32.totalorder %s18, 3
      %p247 = pnand %p245, %p246
      %p248 = pneg %p247
      // Predicated region
      $region29: #{tpu_custom_call.1} parent=5 // pred_check
        _
      $region30: #{tpu_custom_call.1} parent=5 // pred_check_branch
        %250 = sbr.rel (%p247) target = $region32
      $region31: #{tpu_custom_call.1} parent=5 // pred_region
        %s251 = ssub.s32 %s18, 1
        %s252 = sand.u32 %s54, 1
        %s253 = scalar_lea.sflag [#allocation4], %s252
        %s254 = sand.u32 %s54, 1
        %s255 = smul.addr %s254, 2048
        %s256 = scalar_lea.vmem [#allocation3], %s255
        // Predicated region
        $region33: #{tpu_custom_call.1} parent=31 // pred_check
          %p257 = pneg %p67
        $region34: #{tpu_custom_call.1} parent=31 // pred_check_branch
          %259 = sbr.rel (%p257) target = $region36
        $region35: #{tpu_custom_call.1} parent=31 // pred_region
          %260 = dma.done %s253, 32768
        $region36: #{tpu_custom_call.1} parent=31 // pred_fallthru
          _
        %s261 = sand.u32 %s23, 1
        %s262 = scalar_lea.sflag [#allocation7], %s261
        %s263 = sand.u32 %s84, 1
        %s264 = smul.addr %s263, 2048
        %s265 = scalar_lea.vmem [#allocation6], %s264
        // Predicated region
        $region37: #{tpu_custom_call.1} parent=31 // pred_check
          %p266 = pneg %p97
        $region38: #{tpu_custom_call.1} parent=31 // pred_check_branch
          %268 = sbr.rel (%p266) target = $region40
        $region39: #{tpu_custom_call.1} parent=31 // pred_region
          %269 = dma.done %s262, 32768
        $region40: #{tpu_custom_call.1} parent=31 // pred_fallthru
          _
        %s270 = sand.u32 %s23, 1
        %s271 = scalar_lea.sflag [#allocation7], %s270
        %s272 = sand.u32 %s112, 1
        %s273 = smul.addr %s272, 64
        %s274 = scalar_lea.vmem [#allocation8], %s273
        // Predicated region
        $region41: #{tpu_custom_call.1} parent=31 // pred_check
          %p275 = pneg %p125
        $region42: #{tpu_custom_call.1} parent=31 // pred_check_branch
          %277 = sbr.rel (%p275) target = $region44
        $region43: #{tpu_custom_call.1} parent=31 // pred_region
          %278 = dma.done %s271, 1024
        $region44: #{tpu_custom_call.1} parent=31 // pred_fallthru
          _
        %s279 = sand.u32 %s54, 1
        %s280 = scalar_lea.sflag [#allocation4], %s279
        %s281 = sand.u32 %s54, 1
        %s282 = smul.addr %s281, 2048
        %s283 = scalar_lea.vmem [#allocation3], %s282
        %p284 = pneg %p67
        %p285 = pneg %p64
        %s286 = sand.u32 %s23, 1
        %s287 = scalar_lea.sflag [#allocation7], %s286
        %s288 = sand.u32 %s84, 1
        %s289 = smul.addr %s288, 2048
        %s290 = scalar_lea.vmem [#allocation6], %s289
        %p291 = pneg %p97
        %p292 = pneg %p94
        %s293 = sand.u32 %s23, 1
        %s294 = scalar_lea.sflag [#allocation7], %s293
        %s295 = sand.u32 %s112, 1
        %s296 = smul.addr %s295, 64
        %s297 = scalar_lea.vmem [#allocation8], %s296
        %p298 = pneg %p125
        %p299 = pneg %p122
        %p300 = pneg %p151
        %p301 = pneg %p148
        %s302 = sand.u32 %s138, 1
        %s303 = scalar_lea.sflag [#allocation5], %s302
        %s304 = sand.u32 %s138, 1
        %s305 = smul.addr %s304, 8
        %s306 = scalar_lea.vmem [#allocation9], %s305
        %s307 = smul.u32 8, %s28
        %s308 = smul.u32 4, %s30
        %s309 = smul.u32 8, %s29
        %s310 = smul.u32 8, %s28
        %s311 = smul.u32 4, %s30
        %s312 = smul.u32 8, %s29
        %s313 = smul.u32 8, %s29
        %p314 = scmp.eq.s32.totalorder %s29, 0
        %p315 = scmp.eq.s32.totalorder %s30, 0
        %p316 = pnand %p314, %p315
        %p317 = pneg %p316
        // Predicated region
        $region45: #{tpu_custom_call.1} parent=31 // pred_check
          _
        $region46: #{tpu_custom_call.1} parent=31 // pred_check_branch
          %319 = sbr.rel (%p316) target = $region48
        $region47: #{tpu_custom_call.1} parent=31 // pred_region
          %320 = vst [vmem:[%s306] sm:$0xff] 0.0
        $region48: #{tpu_custom_call.1} parent=31 // pred_fallthru
          _
        %v321 = vld [vmem:[%s256] sm:$0xff]
        %v322 = vld [vmem:[%s256 + $0x8] sm:$0xff]
        %v323 = vld [vmem:[%s256 + $0x10] sm:$0xff]
        %v324 = vld [vmem:[%s256 + $0x18] sm:$0xff]
        %v325 = vld [vmem:[%s256 + $0x20] sm:$0xff]
        %v326 = vld [vmem:[%s256 + $0x28] sm:$0xff]
        %v327 = vld [vmem:[%s256 + $0x30] sm:$0xff]
        %v328 = vld [vmem:[%s256 + $0x38] sm:$0xff]
        %v329 = vld [vmem:[%s256 + $0x40] sm:$0xff]
        %v330 = vld [vmem:[%s256 + $0x48] sm:$0xff]
        %v331 = vld [vmem:[%s256 + $0x50] sm:$0xff]
        %v332 = vld [vmem:[%s256 + $0x58] sm:$0xff]
        %v333 = vld [vmem:[%s256 + $0x60] sm:$0xff]
        %v334 = vld [vmem:[%s256 + $0x68] sm:$0xff]
        %v335 = vld [vmem:[%s256 + $0x70] sm:$0xff]
        %v336 = vld [vmem:[%s256 + $0x78] sm:$0xff]
        %v337 = vld [vmem:[%s256 + $0x80] sm:$0xff]
        %v338 = vld [vmem:[%s256 + $0x88] sm:$0xff]
        %v339 = vld [vmem:[%s256 + $0x90] sm:$0xff]
        %v340 = vld [vmem:[%s256 + $0x98] sm:$0xff]
        %v341 = vld [vmem:[%s256 + $0xa0] sm:$0xff]
        %v342 = vld [vmem:[%s256 + $0xa8] sm:$0xff]
        %v343 = vld [vmem:[%s256 + $0xb0] sm:$0xff]
        %v344 = vld [vmem:[%s256 + $0xb8] sm:$0xff]
        %v345 = vld [vmem:[%s256 + $0xc0] sm:$0xff]
        %v346 = vld [vmem:[%s256 + $0xc8] sm:$0xff]
        %v347 = vld [vmem:[%s256 + $0xd0] sm:$0xff]
        %v348 = vld [vmem:[%s256 + $0xd8] sm:$0xff]
        %v349 = vld [vmem:[%s256 + $0xe0] sm:$0xff]
        %v350 = vld [vmem:[%s256 + $0xe8] sm:$0xff]
        %v351 = vld [vmem:[%s256 + $0xf0] sm:$0xff]
        %v352 = vld [vmem:[%s256 + $0xf8] sm:$0xff]
        %v353 = vld [vmem:[%s256 + $0x100] sm:$0xff]
        %v354 = vld [vmem:[%s256 + $0x108] sm:$0xff]
        %v355 = vld [vmem:[%s256 + $0x110] sm:$0xff]
        %v356 = vld [vmem:[%s256 + $0x118] sm:$0xff]
        %v357 = vld [vmem:[%s256 + $0x120] sm:$0xff]
        %v358 = vld [vmem:[%s256 + $0x128] sm:$0xff]
        %v359 = vld [vmem:[%s256 + $0x130] sm:$0xff]
        %v360 = vld [vmem:[%s256 + $0x138] sm:$0xff]
        %v361 = vld [vmem:[%s256 + $0x140] sm:$0xff]
        %v362 = vld [vmem:[%s256 + $0x148] sm:$0xff]
        %v363 = vld [vmem:[%s256 + $0x150] sm:$0xff]
        %v364 = vld [vmem:[%s256 + $0x158] sm:$0xff]
        %v365 = vld [vmem:[%s256 + $0x160] sm:$0xff]
        %v366 = vld [vmem:[%s256 + $0x168] sm:$0xff]
        %v367 = vld [vmem:[%s256 + $0x170] sm:$0xff]
        %v368 = vld [vmem:[%s256 + $0x178] sm:$0xff]
        %v369 = vld [vmem:[%s256 + $0x180] sm:$0xff]
        %v370 = vld [vmem:[%s256 + $0x188] sm:$0xff]
        %v371 = vld [vmem:[%s256 + $0x190] sm:$0xff]
        %v372 = vld [vmem:[%s256 + $0x198] sm:$0xff]
        %v373 = vld [vmem:[%s256 + $0x1a0] sm:$0xff]
        %v374 = vld [vmem:[%s256 + $0x1a8] sm:$0xff]
        %v375 = vld [vmem:[%s256 + $0x1b0] sm:$0xff]
        %v376 = vld [vmem:[%s256 + $0x1b8] sm:$0xff]
        %v377 = vld [vmem:[%s256 + $0x1c0] sm:$0xff]
        %v378 = vld [vmem:[%s256 + $0x1c8] sm:$0xff]
        %v379 = vld [vmem:[%s256 + $0x1d0] sm:$0xff]
        %v380 = vld [vmem:[%s256 + $0x1d8] sm:$0xff]
        %v381 = vld [vmem:[%s256 + $0x1e0] sm:$0xff]
        %v382 = vld [vmem:[%s256 + $0x1e8] sm:$0xff]
        %v383 = vld [vmem:[%s256 + $0x1f0] sm:$0xff]
        %v384 = vld [vmem:[%s256 + $0x1f8] sm:$0xff]
        %v385 = vld [vmem:[%s256 + $0x200] sm:$0xff]
        %v386 = vld [vmem:[%s256 + $0x208] sm:$0xff]
        %v387 = vld [vmem:[%s256 + $0x210] sm:$0xff]
        %v388 = vld [vmem:[%s256 + $0x218] sm:$0xff]
        %v389 = vld [vmem:[%s256 + $0x220] sm:$0xff]
        %v390 = vld [vmem:[%s256 + $0x228] sm:$0xff]
        %v391 = vld [vmem:[%s256 + $0x230] sm:$0xff]
        %v392 = vld [vmem:[%s256 + $0x238] sm:$0xff]
        %v393 = vld [vmem:[%s256 + $0x240] sm:$0xff]
        %v394 = vld [vmem:[%s256 + $0x248] sm:$0xff]
        %v395 = vld [vmem:[%s256 + $0x250] sm:$0xff]
        %v396 = vld [vmem:[%s256 + $0x258] sm:$0xff]
        %v397 = vld [vmem:[%s256 + $0x260] sm:$0xff]
        %v398 = vld [vmem:[%s256 + $0x268] sm:$0xff]
        %v399 = vld [vmem:[%s256 + $0x270] sm:$0xff]
        %v400 = vld [vmem:[%s256 + $0x278] sm:$0xff]
        %v401 = vld [vmem:[%s256 + $0x280] sm:$0xff]
        %v402 = vld [vmem:[%s256 + $0x288] sm:$0xff]
        %v403 = vld [vmem:[%s256 + $0x290] sm:$0xff]
        %v404 = vld [vmem:[%s256 + $0x298] sm:$0xff]
        %v405 = vld [vmem:[%s256 + $0x2a0] sm:$0xff]
        %v406 = vld [vmem:[%s256 + $0x2a8] sm:$0xff]
        %v407 = vld [vmem:[%s256 + $0x2b0] sm:$0xff]
        %v408 = vld [vmem:[%s256 + $0x2b8] sm:$0xff]
        %v409 = vld [vmem:[%s256 + $0x2c0] sm:$0xff]
        %v410 = vld [vmem:[%s256 + $0x2c8] sm:$0xff]
        %v411 = vld [vmem:[%s256 + $0x2d0] sm:$0xff]
        %v412 = vld [vmem:[%s256 + $0x2d8] sm:$0xff]
        %v413 = vld [vmem:[%s256 + $0x2e0] sm:$0xff]
        %v414 = vld [vmem:[%s256 + $0x2e8] sm:$0xff]
        %v415 = vld [vmem:[%s256 + $0x2f0] sm:$0xff]
        %v416 = vld [vmem:[%s256 + $0x2f8] sm:$0xff]
        %v417 = vld [vmem:[%s256 + $0x300] sm:$0xff]
        %v418 = vld [vmem:[%s256 + $0x308] sm:$0xff]
        %v419 = vld [vmem:[%s256 + $0x310] sm:$0xff]
        %v420 = vld [vmem:[%s256 + $0x318] sm:$0xff]
        %v421 = vld [vmem:[%s256 + $0x320] sm:$0xff]
        %v422 = vld [vmem:[%s256 + $0x328] sm:$0xff]
        %v423 = vld [vmem:[%s256 + $0x330] sm:$0xff]
        %v424 = vld [vmem:[%s256 + $0x338] sm:$0xff]
        %v425 = vld [vmem:[%s256 + $0x340] sm:$0xff]
        %v426 = vld [vmem:[%s256 + $0x348] sm:$0xff]
        %v427 = vld [vmem:[%s256 + $0x350] sm:$0xff]
        %v428 = vld [vmem:[%s256 + $0x358] sm:$0xff]
        %v429 = vld [vmem:[%s256 + $0x360] sm:$0xff]
        %v430 = vld [vmem:[%s256 + $0x368] sm:$0xff]
        %v431 = vld [vmem:[%s256 + $0x370] sm:$0xff]
        %v432 = vld [vmem:[%s256 + $0x378] sm:$0xff]
        %v433 = vld [vmem:[%s256 + $0x380] sm:$0xff]
        %v434 = vld [vmem:[%s256 + $0x388] sm:$0xff]
        %v435 = vld [vmem:[%s256 + $0x390] sm:$0xff]
        %v436 = vld [vmem:[%s256 + $0x398] sm:$0xff]
        %v437 = vld [vmem:[%s256 + $0x3a0] sm:$0xff]
        %v438 = vld [vmem:[%s256 + $0x3a8] sm:$0xff]
        %v439 = vld [vmem:[%s256 + $0x3b0] sm:$0xff]
        %v440 = vld [vmem:[%s256 + $0x3b8] sm:$0xff]
        %v441 = vld [vmem:[%s256 + $0x3c0] sm:$0xff]
        %v442 = vld [vmem:[%s256 + $0x3c8] sm:$0xff]
        %v443 = vld [vmem:[%s256 + $0x3d0] sm:$0xff]
        %v444 = vld [vmem:[%s256 + $0x3d8] sm:$0xff]
        %v445 = vld [vmem:[%s256 + $0x3e0] sm:$0xff]
        %v446 = vld [vmem:[%s256 + $0x3e8] sm:$0xff]
        %v447 = vld [vmem:[%s256 + $0x3f0] sm:$0xff]
        %v448 = vld [vmem:[%s256 + $0x3f8] sm:$0xff]
        %v449 = vld [vmem:[%s256 + $0x400] sm:$0xff]
        %v450 = vld [vmem:[%s256 + $0x408] sm:$0xff]
        %v451 = vld [vmem:[%s256 + $0x410] sm:$0xff]
        %v452 = vld [vmem:[%s256 + $0x418] sm:$0xff]
        %v453 = vld [vmem:[%s256 + $0x420] sm:$0xff]
        %v454 = vld [vmem:[%s256 + $0x428] sm:$0xff]
        %v455 = vld [vmem:[%s256 + $0x430] sm:$0xff]
        %v456 = vld [vmem:[%s256 + $0x438] sm:$0xff]
        %v457 = vld [vmem:[%s256 + $0x440] sm:$0xff]
        %v458 = vld [vmem:[%s256 + $0x448] sm:$0xff]
        %v459 = vld [vmem:[%s256 + $0x450] sm:$0xff]
        %v460 = vld [vmem:[%s256 + $0x458] sm:$0xff]
        %v461 = vld [vmem:[%s256 + $0x460] sm:$0xff]
        %v462 = vld [vmem:[%s256 + $0x468] sm:$0xff]
        %v463 = vld [vmem:[%s256 + $0x470] sm:$0xff]
        %v464 = vld [vmem:[%s256 + $0x478] sm:$0xff]
        %v465 = vld [vmem:[%s256 + $0x480] sm:$0xff]
        %v466 = vld [vmem:[%s256 + $0x488] sm:$0xff]
        %v467 = vld [vmem:[%s256 + $0x490] sm:$0xff]
        %v468 = vld [vmem:[%s256 + $0x498] sm:$0xff]
        %v469 = vld [vmem:[%s256 + $0x4a0] sm:$0xff]
        %v470 = vld [vmem:[%s256 + $0x4a8] sm:$0xff]
        %v471 = vld [vmem:[%s256 + $0x4b0] sm:$0xff]
        %v472 = vld [vmem:[%s256 + $0x4b8] sm:$0xff]
        %v473 = vld [vmem:[%s256 + $0x4c0] sm:$0xff]
        %v474 = vld [vmem:[%s256 + $0x4c8] sm:$0xff]
        %v475 = vld [vmem:[%s256 + $0x4d0] sm:$0xff]
        %v476 = vld [vmem:[%s256 + $0x4d8] sm:$0xff]
        %v477 = vld [vmem:[%s256 + $0x4e0] sm:$0xff]
        %v478 = vld [vmem:[%s256 + $0x4e8] sm:$0xff]
        %v479 = vld [vmem:[%s256 + $0x4f0] sm:$0xff]
        %v480 = vld [vmem:[%s256 + $0x4f8] sm:$0xff]
        %v481 = vld [vmem:[%s256 + $0x500] sm:$0xff]
        %v482 = vld [vmem:[%s256 + $0x508] sm:$0xff]
        %v483 = vld [vmem:[%s256 + $0x510] sm:$0xff]
        %v484 = vld [vmem:[%s256 + $0x518] sm:$0xff]
        %v485 = vld [vmem:[%s256 + $0x520] sm:$0xff]
        %v486 = vld [vmem:[%s256 + $0x528] sm:$0xff]
        %v487 = vld [vmem:[%s256 + $0x530] sm:$0xff]
        %v488 = vld [vmem:[%s256 + $0x538] sm:$0xff]
        %v489 = vld [vmem:[%s256 + $0x540] sm:$0xff]
        %v490 = vld [vmem:[%s256 + $0x548] sm:$0xff]
        %v491 = vld [vmem:[%s256 + $0x550] sm:$0xff]
        %v492 = vld [vmem:[%s256 + $0x558] sm:$0xff]
        %v493 = vld [vmem:[%s256 + $0x560] sm:$0xff]
        %v494 = vld [vmem:[%s256 + $0x568] sm:$0xff]
        %v495 = vld [vmem:[%s256 + $0x570] sm:$0xff]
        %v496 = vld [vmem:[%s256 + $0x578] sm:$0xff]
        %v497 = vld [vmem:[%s256 + $0x580] sm:$0xff]
        %v498 = vld [vmem:[%s256 + $0x588] sm:$0xff]
        %v499 = vld [vmem:[%s256 + $0x590] sm:$0xff]
        %v500 = vld [vmem:[%s256 + $0x598] sm:$0xff]
        %v501 = vld [vmem:[%s256 + $0x5a0] sm:$0xff]
        %v502 = vld [vmem:[%s256 + $0x5a8] sm:$0xff]
        %v503 = vld [vmem:[%s256 + $0x5b0] sm:$0xff]
        %v504 = vld [vmem:[%s256 + $0x5b8] sm:$0xff]
        %v505 = vld [vmem:[%s256 + $0x5c0] sm:$0xff]
        %v506 = vld [vmem:[%s256 + $0x5c8] sm:$0xff]
        %v507 = vld [vmem:[%s256 + $0x5d0] sm:$0xff]
        %v508 = vld [vmem:[%s256 + $0x5d8] sm:$0xff]
        %v509 = vld [vmem:[%s256 + $0x5e0] sm:$0xff]
        %v510 = vld [vmem:[%s256 + $0x5e8] sm:$0xff]
        %v511 = vld [vmem:[%s256 + $0x5f0] sm:$0xff]
        %v512 = vld [vmem:[%s256 + $0x5f8] sm:$0xff]
        %v513 = vld [vmem:[%s256 + $0x600] sm:$0xff]
        %v514 = vld [vmem:[%s256 + $0x608] sm:$0xff]
        %v515 = vld [vmem:[%s256 + $0x610] sm:$0xff]
        %v516 = vld [vmem:[%s256 + $0x618] sm:$0xff]
        %v517 = vld [vmem:[%s256 + $0x620] sm:$0xff]
        %v518 = vld [vmem:[%s256 + $0x628] sm:$0xff]
        %v519 = vld [vmem:[%s256 + $0x630] sm:$0xff]
        %v520 = vld [vmem:[%s256 + $0x638] sm:$0xff]
        %v521 = vld [vmem:[%s256 + $0x640] sm:$0xff]
        %v522 = vld [vmem:[%s256 + $0x648] sm:$0xff]
        %v523 = vld [vmem:[%s256 + $0x650] sm:$0xff]
        %v524 = vld [vmem:[%s256 + $0x658] sm:$0xff]
        %v525 = vld [vmem:[%s256 + $0x660] sm:$0xff]
        %v526 = vld [vmem:[%s256 + $0x668] sm:$0xff]
        %v527 = vld [vmem:[%s256 + $0x670] sm:$0xff]
        %v528 = vld [vmem:[%s256 + $0x678] sm:$0xff]
        %v529 = vld [vmem:[%s256 + $0x680] sm:$0xff]
        %v530 = vld [vmem:[%s256 + $0x688] sm:$0xff]
        %v531 = vld [vmem:[%s256 + $0x690] sm:$0xff]
        %v532 = vld [vmem:[%s256 + $0x698] sm:$0xff]
        %v533 = vld [vmem:[%s256 + $0x6a0] sm:$0xff]
        %v534 = vld [vmem:[%s256 + $0x6a8] sm:$0xff]
        %v535 = vld [vmem:[%s256 + $0x6b0] sm:$0xff]
        %v536 = vld [vmem:[%s256 + $0x6b8] sm:$0xff]
        %v537 = vld [vmem:[%s256 + $0x6c0] sm:$0xff]
        %v538 = vld [vmem:[%s256 + $0x6c8] sm:$0xff]
        %v539 = vld [vmem:[%s256 + $0x6d0] sm:$0xff]
        %v540 = vld [vmem:[%s256 + $0x6d8] sm:$0xff]
        %v541 = vld [vmem:[%s256 + $0x6e0] sm:$0xff]
        %v542 = vld [vmem:[%s256 + $0x6e8] sm:$0xff]
        %v543 = vld [vmem:[%s256 + $0x6f0] sm:$0xff]
        %v544 = vld [vmem:[%s256 + $0x6f8] sm:$0xff]
        %v545 = vld [vmem:[%s256 + $0x700] sm:$0xff]
        %v546 = vld [vmem:[%s256 + $0x708] sm:$0xff]
        %v547 = vld [vmem:[%s256 + $0x710] sm:$0xff]
        %v548 = vld [vmem:[%s256 + $0x718] sm:$0xff]
        %v549 = vld [vmem:[%s256 + $0x720] sm:$0xff]
        %v550 = vld [vmem:[%s256 + $0x728] sm:$0xff]
        %v551 = vld [vmem:[%s256 + $0x730] sm:$0xff]
        %v552 = vld [vmem:[%s256 + $0x738] sm:$0xff]
        %v553 = vld [vmem:[%s256 + $0x740] sm:$0xff]
        %v554 = vld [vmem:[%s256 + $0x748] sm:$0xff]
        %v555 = vld [vmem:[%s256 + $0x750] sm:$0xff]
        %v556 = vld [vmem:[%s256 + $0x758] sm:$0xff]
        %v557 = vld [vmem:[%s256 + $0x760] sm:$0xff]
        %v558 = vld [vmem:[%s256 + $0x768] sm:$0xff]
        %v559 = vld [vmem:[%s256 + $0x770] sm:$0xff]
        %v560 = vld [vmem:[%s256 + $0x778] sm:$0xff]
        %v561 = vld [vmem:[%s256 + $0x780] sm:$0xff]
        %v562 = vld [vmem:[%s256 + $0x788] sm:$0xff]
        %v563 = vld [vmem:[%s256 + $0x790] sm:$0xff]
        %v564 = vld [vmem:[%s256 + $0x798] sm:$0xff]
        %v565 = vld [vmem:[%s256 + $0x7a0] sm:$0xff]
        %v566 = vld [vmem:[%s256 + $0x7a8] sm:$0xff]
        %v567 = vld [vmem:[%s256 + $0x7b0] sm:$0xff]
        %v568 = vld [vmem:[%s256 + $0x7b8] sm:$0xff]
        %v569 = vld [vmem:[%s256 + $0x7c0] sm:$0xff]
        %v570 = vld [vmem:[%s256 + $0x7c8] sm:$0xff]
        %v571 = vld [vmem:[%s256 + $0x7d0] sm:$0xff]
        %v572 = vld [vmem:[%s256 + $0x7d8] sm:$0xff]
        %v573 = vld [vmem:[%s256 + $0x7e0] sm:$0xff]
        %v574 = vld [vmem:[%s256 + $0x7e8] sm:$0xff]
        %v575 = vld [vmem:[%s256 + $0x7f0] sm:$0xff]
        %v576 = vld [vmem:[%s256 + $0x7f8] sm:$0xff]
        %v577 = vld [vmem:[%s265] sm:$0xff]
        %v578 = vld [vmem:[%s265 + $0x8] sm:$0xff]
        %v579 = vld [vmem:[%s265 + $0x10] sm:$0xff]
        %v580 = vld [vmem:[%s265 + $0x18] sm:$0xff]
        %v581 = vld [vmem:[%s265 + $0x20] sm:$0xff]
        %v582 = vld [vmem:[%s265 + $0x28] sm:$0xff]
        %v583 = vld [vmem:[%s265 + $0x30] sm:$0xff]
        %v584 = vld [vmem:[%s265 + $0x38] sm:$0xff]
        %v585 = vld [vmem:[%s265 + $0x40] sm:$0xff]
        %v586 = vld [vmem:[%s265 + $0x48] sm:$0xff]
        %v587 = vld [vmem:[%s265 + $0x50] sm:$0xff]
        %v588 = vld [vmem:[%s265 + $0x58] sm:$0xff]
        %v589 = vld [vmem:[%s265 + $0x60] sm:$0xff]
        %v590 = vld [vmem:[%s265 + $0x68] sm:$0xff]
        %v591 = vld [vmem:[%s265 + $0x70] sm:$0xff]
        %v592 = vld [vmem:[%s265 + $0x78] sm:$0xff]
        %v593 = vld [vmem:[%s265 + $0x80] sm:$0xff]
        %v594 = vld [vmem:[%s265 + $0x88] sm:$0xff]
        %v595 = vld [vmem:[%s265 + $0x90] sm:$0xff]
        %v596 = vld [vmem:[%s265 + $0x98] sm:$0xff]
        %v597 = vld [vmem:[%s265 + $0xa0] sm:$0xff]
        %v598 = vld [vmem:[%s265 + $0xa8] sm:$0xff]
        %v599 = vld [vmem:[%s265 + $0xb0] sm:$0xff]
        %v600 = vld [vmem:[%s265 + $0xb8] sm:$0xff]
        %v601 = vld [vmem:[%s265 + $0xc0] sm:$0xff]
        %v602 = vld [vmem:[%s265 + $0xc8] sm:$0xff]
        %v603 = vld [vmem:[%s265 + $0xd0] sm:$0xff]
        %v604 = vld [vmem:[%s265 + $0xd8] sm:$0xff]
        %v605 = vld [vmem:[%s265 + $0xe0] sm:$0xff]
        %v606 = vld [vmem:[%s265 + $0xe8] sm:$0xff]
        %v607 = vld [vmem:[%s265 + $0xf0] sm:$0xff]
        %v608 = vld [vmem:[%s265 + $0xf8] sm:$0xff]
        %v609 = vld [vmem:[%s265 + $0x100] sm:$0xff]
        %v610 = vld [vmem:[%s265 + $0x108] sm:$0xff]
        %v611 = vld [vmem:[%s265 + $0x110] sm:$0xff]
        %v612 = vld [vmem:[%s265 + $0x118] sm:$0xff]
        %v613 = vld [vmem:[%s265 + $0x120] sm:$0xff]
        %v614 = vld [vmem:[%s265 + $0x128] sm:$0xff]
        %v615 = vld [vmem:[%s265 + $0x130] sm:$0xff]
        %v616 = vld [vmem:[%s265 + $0x138] sm:$0xff]
        %v617 = vld [vmem:[%s265 + $0x140] sm:$0xff]
        %v618 = vld [vmem:[%s265 + $0x148] sm:$0xff]
        %v619 = vld [vmem:[%s265 + $0x150] sm:$0xff]
        %v620 = vld [vmem:[%s265 + $0x158] sm:$0xff]
        %v621 = vld [vmem:[%s265 + $0x160] sm:$0xff]
        %v622 = vld [vmem:[%s265 + $0x168] sm:$0xff]
        %v623 = vld [vmem:[%s265 + $0x170] sm:$0xff]
        %v624 = vld [vmem:[%s265 + $0x178] sm:$0xff]
        %v625 = vld [vmem:[%s265 + $0x180] sm:$0xff]
        %v626 = vld [vmem:[%s265 + $0x188] sm:$0xff]
        %v627 = vld [vmem:[%s265 + $0x190] sm:$0xff]
        %v628 = vld [vmem:[%s265 + $0x198] sm:$0xff]
        %v629 = vld [vmem:[%s265 + $0x1a0] sm:$0xff]
        %v630 = vld [vmem:[%s265 + $0x1a8] sm:$0xff]
        %v631 = vld [vmem:[%s265 + $0x1b0] sm:$0xff]
        %v632 = vld [vmem:[%s265 + $0x1b8] sm:$0xff]
        %v633 = vld [vmem:[%s265 + $0x1c0] sm:$0xff]
        %v634 = vld [vmem:[%s265 + $0x1c8] sm:$0xff]
        %v635 = vld [vmem:[%s265 + $0x1d0] sm:$0xff]
        %v636 = vld [vmem:[%s265 + $0x1d8] sm:$0xff]
        %v637 = vld [vmem:[%s265 + $0x1e0] sm:$0xff]
        %v638 = vld [vmem:[%s265 + $0x1e8] sm:$0xff]
        %v639 = vld [vmem:[%s265 + $0x1f0] sm:$0xff]
        %v640 = vld [vmem:[%s265 + $0x1f8] sm:$0xff]
        %v641 = vld [vmem:[%s265 + $0x200] sm:$0xff]
        %v642 = vld [vmem:[%s265 + $0x208] sm:$0xff]
        %v643 = vld [vmem:[%s265 + $0x210] sm:$0xff]
        %v644 = vld [vmem:[%s265 + $0x218] sm:$0xff]
        %v645 = vld [vmem:[%s265 + $0x220] sm:$0xff]
        %v646 = vld [vmem:[%s265 + $0x228] sm:$0xff]
        %v647 = vld [vmem:[%s265 + $0x230] sm:$0xff]
        %v648 = vld [vmem:[%s265 + $0x238] sm:$0xff]
        %v649 = vld [vmem:[%s265 + $0x240] sm:$0xff]
        %v650 = vld [vmem:[%s265 + $0x248] sm:$0xff]
        %v651 = vld [vmem:[%s265 + $0x250] sm:$0xff]
        %v652 = vld [vmem:[%s265 + $0x258] sm:$0xff]
        %v653 = vld [vmem:[%s265 + $0x260] sm:$0xff]
        %v654 = vld [vmem:[%s265 + $0x268] sm:$0xff]
        %v655 = vld [vmem:[%s265 + $0x270] sm:$0xff]
        %v656 = vld [vmem:[%s265 + $0x278] sm:$0xff]
        %v657 = vld [vmem:[%s265 + $0x280] sm:$0xff]
        %v658 = vld [vmem:[%s265 + $0x288] sm:$0xff]
        %v659 = vld [vmem:[%s265 + $0x290] sm:$0xff]
        %v660 = vld [vmem:[%s265 + $0x298] sm:$0xff]
        %v661 = vld [vmem:[%s265 + $0x2a0] sm:$0xff]
        %v662 = vld [vmem:[%s265 + $0x2a8] sm:$0xff]
        %v663 = vld [vmem:[%s265 + $0x2b0] sm:$0xff]
        %v664 = vld [vmem:[%s265 + $0x2b8] sm:$0xff]
        %v665 = vld [vmem:[%s265 + $0x2c0] sm:$0xff]
        %v666 = vld [vmem:[%s265 + $0x2c8] sm:$0xff]
        %v667 = vld [vmem:[%s265 + $0x2d0] sm:$0xff]
        %v668 = vld [vmem:[%s265 + $0x2d8] sm:$0xff]
        %v669 = vld [vmem:[%s265 + $0x2e0] sm:$0xff]
        %v670 = vld [vmem:[%s265 + $0x2e8] sm:$0xff]
        %v671 = vld [vmem:[%s265 + $0x2f0] sm:$0xff]
        %v672 = vld [vmem:[%s265 + $0x2f8] sm:$0xff]
        %v673 = vld [vmem:[%s265 + $0x300] sm:$0xff]
        %v674 = vld [vmem:[%s265 + $0x308] sm:$0xff]
        %v675 = vld [vmem:[%s265 + $0x310] sm:$0xff]
        %v676 = vld [vmem:[%s265 + $0x318] sm:$0xff]
        %v677 = vld [vmem:[%s265 + $0x320] sm:$0xff]
        %v678 = vld [vmem:[%s265 + $0x328] sm:$0xff]
        %v679 = vld [vmem:[%s265 + $0x330] sm:$0xff]
        %v680 = vld [vmem:[%s265 + $0x338] sm:$0xff]
        %v681 = vld [vmem:[%s265 + $0x340] sm:$0xff]
        %v682 = vld [vmem:[%s265 + $0x348] sm:$0xff]
        %v683 = vld [vmem:[%s265 + $0x350] sm:$0xff]
        %v684 = vld [vmem:[%s265 + $0x358] sm:$0xff]
        %v685 = vld [vmem:[%s265 + $0x360] sm:$0xff]
        %v686 = vld [vmem:[%s265 + $0x368] sm:$0xff]
        %v687 = vld [vmem:[%s265 + $0x370] sm:$0xff]
        %v688 = vld [vmem:[%s265 + $0x378] sm:$0xff]
        %v689 = vld [vmem:[%s265 + $0x380] sm:$0xff]
        %v690 = vld [vmem:[%s265 + $0x388] sm:$0xff]
        %v691 = vld [vmem:[%s265 + $0x390] sm:$0xff]
        %v692 = vld [vmem:[%s265 + $0x398] sm:$0xff]
        %v693 = vld [vmem:[%s265 + $0x3a0] sm:$0xff]
        %v694 = vld [vmem:[%s265 + $0x3a8] sm:$0xff]
        %v695 = vld [vmem:[%s265 + $0x3b0] sm:$0xff]
        %v696 = vld [vmem:[%s265 + $0x3b8] sm:$0xff]
        %v697 = vld [vmem:[%s265 + $0x3c0] sm:$0xff]
        %v698 = vld [vmem:[%s265 + $0x3c8] sm:$0xff]
        %v699 = vld [vmem:[%s265 + $0x3d0] sm:$0xff]
        %v700 = vld [vmem:[%s265 + $0x3d8] sm:$0xff]
        %v701 = vld [vmem:[%s265 + $0x3e0] sm:$0xff]
        %v702 = vld [vmem:[%s265 + $0x3e8] sm:$0xff]
        %v703 = vld [vmem:[%s265 + $0x3f0] sm:$0xff]
        %v704 = vld [vmem:[%s265 + $0x3f8] sm:$0xff]
        %v705 = vld [vmem:[%s265 + $0x400] sm:$0xff]
        %v706 = vld [vmem:[%s265 + $0x408] sm:$0xff]
        %v707 = vld [vmem:[%s265 + $0x410] sm:$0xff]
        %v708 = vld [vmem:[%s265 + $0x418] sm:$0xff]
        %v709 = vld [vmem:[%s265 + $0x420] sm:$0xff]
        %v710 = vld [vmem:[%s265 + $0x428] sm:$0xff]
        %v711 = vld [vmem:[%s265 + $0x430] sm:$0xff]
        %v712 = vld [vmem:[%s265 + $0x438] sm:$0xff]
        %v713 = vld [vmem:[%s265 + $0x440] sm:$0xff]
        %v714 = vld [vmem:[%s265 + $0x448] sm:$0xff]
        %v715 = vld [vmem:[%s265 + $0x450] sm:$0xff]
        %v716 = vld [vmem:[%s265 + $0x458] sm:$0xff]
        %v717 = vld [vmem:[%s265 + $0x460] sm:$0xff]
        %v718 = vld [vmem:[%s265 + $0x468] sm:$0xff]
        %v719 = vld [vmem:[%s265 + $0x470] sm:$0xff]
        %v720 = vld [vmem:[%s265 + $0x478] sm:$0xff]
        %v721 = vld [vmem:[%s265 + $0x480] sm:$0xff]
        %v722 = vld [vmem:[%s265 + $0x488] sm:$0xff]
        %v723 = vld [vmem:[%s265 + $0x490] sm:$0xff]
        %v724 = vld [vmem:[%s265 + $0x498] sm:$0xff]
        %v725 = vld [vmem:[%s265 + $0x4a0] sm:$0xff]
        %v726 = vld [vmem:[%s265 + $0x4a8] sm:$0xff]
        %v727 = vld [vmem:[%s265 + $0x4b0] sm:$0xff]
        %v728 = vld [vmem:[%s265 + $0x4b8] sm:$0xff]
        %v729 = vld [vmem:[%s265 + $0x4c0] sm:$0xff]
        %v730 = vld [vmem:[%s265 + $0x4c8] sm:$0xff]
        %v731 = vld [vmem:[%s265 + $0x4d0] sm:$0xff]
        %v732 = vld [vmem:[%s265 + $0x4d8] sm:$0xff]
        %v733 = vld [vmem:[%s265 + $0x4e0] sm:$0xff]
        %v734 = vld [vmem:[%s265 + $0x4e8] sm:$0xff]
        %v735 = vld [vmem:[%s265 + $0x4f0] sm:$0xff]
        %v736 = vld [vmem:[%s265 + $0x4f8] sm:$0xff]
        %v737 = vld [vmem:[%s265 + $0x500] sm:$0xff]
        %v738 = vld [vmem:[%s265 + $0x508] sm:$0xff]
        %v739 = vld [vmem:[%s265 + $0x510] sm:$0xff]
        %v740 = vld [vmem:[%s265 + $0x518] sm:$0xff]
        %v741 = vld [vmem:[%s265 + $0x520] sm:$0xff]
        %v742 = vld [vmem:[%s265 + $0x528] sm:$0xff]
        %v743 = vld [vmem:[%s265 + $0x530] sm:$0xff]
        %v744 = vld [vmem:[%s265 + $0x538] sm:$0xff]
        %v745 = vld [vmem:[%s265 + $0x540] sm:$0xff]
        %v746 = vld [vmem:[%s265 + $0x548] sm:$0xff]
        %v747 = vld [vmem:[%s265 + $0x550] sm:$0xff]
        %v748 = vld [vmem:[%s265 + $0x558] sm:$0xff]
        %v749 = vld [vmem:[%s265 + $0x560] sm:$0xff]
        %v750 = vld [vmem:[%s265 + $0x568] sm:$0xff]
        %v751 = vld [vmem:[%s265 + $0x570] sm:$0xff]
        %v752 = vld [vmem:[%s265 + $0x578] sm:$0xff]
        %v753 = vld [vmem:[%s265 + $0x580] sm:$0xff]
        %v754 = vld [vmem:[%s265 + $0x588] sm:$0xff]
        %v755 = vld [vmem:[%s265 + $0x590] sm:$0xff]
        %v756 = vld [vmem:[%s265 + $0x598] sm:$0xff]
        %v757 = vld [vmem:[%s265 + $0x5a0] sm:$0xff]
        %v758 = vld [vmem:[%s265 + $0x5a8] sm:$0xff]
        %v759 = vld [vmem:[%s265 + $0x5b0] sm:$0xff]
        %v760 = vld [vmem:[%s265 + $0x5b8] sm:$0xff]
        %v761 = vld [vmem:[%s265 + $0x5c0] sm:$0xff]
        %v762 = vld [vmem:[%s265 + $0x5c8] sm:$0xff]
        %v763 = vld [vmem:[%s265 + $0x5d0] sm:$0xff]
        %v764 = vld [vmem:[%s265 + $0x5d8] sm:$0xff]
        %v765 = vld [vmem:[%s265 + $0x5e0] sm:$0xff]
        %v766 = vld [vmem:[%s265 + $0x5e8] sm:$0xff]
        %v767 = vld [vmem:[%s265 + $0x5f0] sm:$0xff]
        %v768 = vld [vmem:[%s265 + $0x5f8] sm:$0xff]
        %v769 = vld [vmem:[%s265 + $0x600] sm:$0xff]
        %v770 = vld [vmem:[%s265 + $0x608] sm:$0xff]
        %v771 = vld [vmem:[%s265 + $0x610] sm:$0xff]
        %v772 = vld [vmem:[%s265 + $0x618] sm:$0xff]
        %v773 = vld [vmem:[%s265 + $0x620] sm:$0xff]
        %v774 = vld [vmem:[%s265 + $0x628] sm:$0xff]
        %v775 = vld [vmem:[%s265 + $0x630] sm:$0xff]
        %v776 = vld [vmem:[%s265 + $0x638] sm:$0xff]
        %v777 = vld [vmem:[%s265 + $0x640] sm:$0xff]
        %v778 = vld [vmem:[%s265 + $0x648] sm:$0xff]
        %v779 = vld [vmem:[%s265 + $0x650] sm:$0xff]
        %v780 = vld [vmem:[%s265 + $0x658] sm:$0xff]
        %v781 = vld [vmem:[%s265 + $0x660] sm:$0xff]
        %v782 = vld [vmem:[%s265 + $0x668] sm:$0xff]
        %v783 = vld [vmem:[%s265 + $0x670] sm:$0xff]
        %v784 = vld [vmem:[%s265 + $0x678] sm:$0xff]
        %v785 = vld [vmem:[%s265 + $0x680] sm:$0xff]
        %v786 = vld [vmem:[%s265 + $0x688] sm:$0xff]
        %v787 = vld [vmem:[%s265 + $0x690] sm:$0xff]
        %v788 = vld [vmem:[%s265 + $0x698] sm:$0xff]
        %v789 = vld [vmem:[%s265 + $0x6a0] sm:$0xff]
        %v790 = vld [vmem:[%s265 + $0x6a8] sm:$0xff]
        %v791 = vld [vmem:[%s265 + $0x6b0] sm:$0xff]
        %v792 = vld [vmem:[%s265 + $0x6b8] sm:$0xff]
        %v793 = vld [vmem:[%s265 + $0x6c0] sm:$0xff]
        %v794 = vld [vmem:[%s265 + $0x6c8] sm:$0xff]
        %v795 = vld [vmem:[%s265 + $0x6d0] sm:$0xff]
        %v796 = vld [vmem:[%s265 + $0x6d8] sm:$0xff]
        %v797 = vld [vmem:[%s265 + $0x6e0] sm:$0xff]
        %v798 = vld [vmem:[%s265 + $0x6e8] sm:$0xff]
        %v799 = vld [vmem:[%s265 + $0x6f0] sm:$0xff]
        %v800 = vld [vmem:[%s265 + $0x6f8] sm:$0xff]
        %v801 = vld [vmem:[%s265 + $0x700] sm:$0xff]
        %v802 = vld [vmem:[%s265 + $0x708] sm:$0xff]
        %v803 = vld [vmem:[%s265 + $0x710] sm:$0xff]
        %v804 = vld [vmem:[%s265 + $0x718] sm:$0xff]
        %v805 = vld [vmem:[%s265 + $0x720] sm:$0xff]
        %v806 = vld [vmem:[%s265 + $0x728] sm:$0xff]
        %v807 = vld [vmem:[%s265 + $0x730] sm:$0xff]
        %v808 = vld [vmem:[%s265 + $0x738] sm:$0xff]
        %v809 = vld [vmem:[%s265 + $0x740] sm:$0xff]
        %v810 = vld [vmem:[%s265 + $0x748] sm:$0xff]
        %v811 = vld [vmem:[%s265 + $0x750] sm:$0xff]
        %v812 = vld [vmem:[%s265 + $0x758] sm:$0xff]
        %v813 = vld [vmem:[%s265 + $0x760] sm:$0xff]
        %v814 = vld [vmem:[%s265 + $0x768] sm:$0xff]
        %v815 = vld [vmem:[%s265 + $0x770] sm:$0xff]
        %v816 = vld [vmem:[%s265 + $0x778] sm:$0xff]
        %v817 = vld [vmem:[%s265 + $0x780] sm:$0xff]
        %v818 = vld [vmem:[%s265 + $0x788] sm:$0xff]
        %v819 = vld [vmem:[%s265 + $0x790] sm:$0xff]
        %v820 = vld [vmem:[%s265 + $0x798] sm:$0xff]
        %v821 = vld [vmem:[%s265 + $0x7a0] sm:$0xff]
        %v822 = vld [vmem:[%s265 + $0x7a8] sm:$0xff]
        %v823 = vld [vmem:[%s265 + $0x7b0] sm:$0xff]
        %v824 = vld [vmem:[%s265 + $0x7b8] sm:$0xff]
        %v825 = vld [vmem:[%s265 + $0x7c0] sm:$0xff]
        %v826 = vld [vmem:[%s265 + $0x7c8] sm:$0xff]
        %v827 = vld [vmem:[%s265 + $0x7d0] sm:$0xff]
        %v828 = vld [vmem:[%s265 + $0x7d8] sm:$0xff]
        %v829 = vld [vmem:[%s265 + $0x7e0] sm:$0xff]
        %v830 = vld [vmem:[%s265 + $0x7e8] sm:$0xff]
        %v831 = vld [vmem:[%s265 + $0x7f0] sm:$0xff]
        %v832 = vld [vmem:[%s265 + $0x7f8] sm:$0xff]
        %v833 = vsub.f32 %v321, %v577
        %v834 = vsub.f32 %v322, %v578
        %v835 = vsub.f32 %v323, %v579
        %v836 = vsub.f32 %v324, %v580
        %v837 = vsub.f32 %v325, %v581
        %v838 = vsub.f32 %v326, %v582
        %v839 = vsub.f32 %v327, %v583
        %v840 = vsub.f32 %v328, %v584
        %v841 = vsub.f32 %v329, %v585
        %v842 = vsub.f32 %v330, %v586
        %v843 = vsub.f32 %v331, %v587
        %v844 = vsub.f32 %v332, %v588
        %v845 = vsub.f32 %v333, %v589
        %v846 = vsub.f32 %v334, %v590
        %v847 = vsub.f32 %v335, %v591
        %v848 = vsub.f32 %v336, %v592
        %v849 = vsub.f32 %v337, %v593
        %v850 = vsub.f32 %v338, %v594
        %v851 = vsub.f32 %v339, %v595
        %v852 = vsub.f32 %v340, %v596
        %v853 = vsub.f32 %v341, %v597
        %v854 = vsub.f32 %v342, %v598
        %v855 = vsub.f32 %v343, %v599
        %v856 = vsub.f32 %v344, %v600
        %v857 = vsub.f32 %v345, %v601
        %v858 = vsub.f32 %v346, %v602
        %v859 = vsub.f32 %v347, %v603
        %v860 = vsub.f32 %v348, %v604
        %v861 = vsub.f32 %v349, %v605
        %v862 = vsub.f32 %v350, %v606
        %v863 = vsub.f32 %v351, %v607
        %v864 = vsub.f32 %v352, %v608
        %v865 = vsub.f32 %v353, %v609
        %v866 = vsub.f32 %v354, %v610
        %v867 = vsub.f32 %v355, %v611
        %v868 = vsub.f32 %v356, %v612
        %v869 = vsub.f32 %v357, %v613
        %v870 = vsub.f32 %v358, %v614
        %v871 = vsub.f32 %v359, %v615
        %v872 = vsub.f32 %v360, %v616
        %v873 = vsub.f32 %v361, %v617
        %v874 = vsub.f32 %v362, %v618
        %v875 = vsub.f32 %v363, %v619
        %v876 = vsub.f32 %v364, %v620
        %v877 = vsub.f32 %v365, %v621
        %v878 = vsub.f32 %v366, %v622
        %v879 = vsub.f32 %v367, %v623
        %v880 = vsub.f32 %v368, %v624
        %v881 = vsub.f32 %v369, %v625
        %v882 = vsub.f32 %v370, %v626
        %v883 = vsub.f32 %v371, %v627
        %v884 = vsub.f32 %v372, %v628
        %v885 = vsub.f32 %v373, %v629
        %v886 = vsub.f32 %v374, %v630
        %v887 = vsub.f32 %v375, %v631
        %v888 = vsub.f32 %v376, %v632
        %v889 = vsub.f32 %v377, %v633
        %v890 = vsub.f32 %v378, %v634
        %v891 = vsub.f32 %v379, %v635
        %v892 = vsub.f32 %v380, %v636
        %v893 = vsub.f32 %v381, %v637
        %v894 = vsub.f32 %v382, %v638
        %v895 = vsub.f32 %v383, %v639
        %v896 = vsub.f32 %v384, %v640
        %v897 = vsub.f32 %v385, %v641
        %v898 = vsub.f32 %v386, %v642
        %v899 = vsub.f32 %v387, %v643
        %v900 = vsub.f32 %v388, %v644
        %v901 = vsub.f32 %v389, %v645
        %v902 = vsub.f32 %v390, %v646
        %v903 = vsub.f32 %v391, %v647
        %v904 = vsub.f32 %v392, %v648
        %v905 = vsub.f32 %v393, %v649
        %v906 = vsub.f32 %v394, %v650
        %v907 = vsub.f32 %v395, %v651
        %v908 = vsub.f32 %v396, %v652
        %v909 = vsub.f32 %v397, %v653
        %v910 = vsub.f32 %v398, %v654
        %v911 = vsub.f32 %v399, %v655
        %v912 = vsub.f32 %v400, %v656
        %v913 = vsub.f32 %v401, %v657
        %v914 = vsub.f32 %v402, %v658
        %v915 = vsub.f32 %v403, %v659
        %v916 = vsub.f32 %v404, %v660
        %v917 = vsub.f32 %v405, %v661
        %v918 = vsub.f32 %v406, %v662
        %v919 = vsub.f32 %v407, %v663
        %v920 = vsub.f32 %v408, %v664
        %v921 = vsub.f32 %v409, %v665
        %v922 = vsub.f32 %v410, %v666
        %v923 = vsub.f32 %v411, %v667
        %v924 = vsub.f32 %v412, %v668
        %v925 = vsub.f32 %v413, %v669
        %v926 = vsub.f32 %v414, %v670
        %v927 = vsub.f32 %v415, %v671
        %v928 = vsub.f32 %v416, %v672
        %v929 = vsub.f32 %v417, %v673
        %v930 = vsub.f32 %v418, %v674
        %v931 = vsub.f32 %v419, %v675
        %v932 = vsub.f32 %v420, %v676
        %v933 = vsub.f32 %v421, %v677
        %v934 = vsub.f32 %v422, %v678
        %v935 = vsub.f32 %v423, %v679
        %v936 = vsub.f32 %v424, %v680
        %v937 = vsub.f32 %v425, %v681
        %v938 = vsub.f32 %v426, %v682
        %v939 = vsub.f32 %v427, %v683
        %v940 = vsub.f32 %v428, %v684
        %v941 = vsub.f32 %v429, %v685
        %v942 = vsub.f32 %v430, %v686
        %v943 = vsub.f32 %v431, %v687
        %v944 = vsub.f32 %v432, %v688
        %v945 = vsub.f32 %v433, %v689
        %v946 = vsub.f32 %v434, %v690
        %v947 = vsub.f32 %v435, %v691
        %v948 = vsub.f32 %v436, %v692
        %v949 = vsub.f32 %v437, %v693
        %v950 = vsub.f32 %v438, %v694
        %v951 = vsub.f32 %v439, %v695
        %v952 = vsub.f32 %v440, %v696
        %v953 = vsub.f32 %v441, %v697
        %v954 = vsub.f32 %v442, %v698
        %v955 = vsub.f32 %v443, %v699
        %v956 = vsub.f32 %v444, %v700
        %v957 = vsub.f32 %v445, %v701
        %v958 = vsub.f32 %v446, %v702
        %v959 = vsub.f32 %v447, %v703
        %v960 = vsub.f32 %v448, %v704
        %v961 = vsub.f32 %v449, %v705
        %v962 = vsub.f32 %v450, %v706
        %v963 = vsub.f32 %v451, %v707
        %v964 = vsub.f32 %v452, %v708
        %v965 = vsub.f32 %v453, %v709
        %v966 = vsub.f32 %v454, %v710
        %v967 = vsub.f32 %v455, %v711
        %v968 = vsub.f32 %v456, %v712
        %v969 = vsub.f32 %v457, %v713
        %v970 = vsub.f32 %v458, %v714
        %v971 = vsub.f32 %v459, %v715
        %v972 = vsub.f32 %v460, %v716
        %v973 = vsub.f32 %v461, %v717
        %v974 = vsub.f32 %v462, %v718
        %v975 = vsub.f32 %v463, %v719
        %v976 = vsub.f32 %v464, %v720
        %v977 = vsub.f32 %v465, %v721
        %v978 = vsub.f32 %v466, %v722
        %v979 = vsub.f32 %v467, %v723
        %v980 = vsub.f32 %v468, %v724
        %v981 = vsub.f32 %v469, %v725
        %v982 = vsub.f32 %v470, %v726
        %v983 = vsub.f32 %v471, %v727
        %v984 = vsub.f32 %v472, %v728
        %v985 = vsub.f32 %v473, %v729
        %v986 = vsub.f32 %v474, %v730
        %v987 = vsub.f32 %v475, %v731
        %v988 = vsub.f32 %v476, %v732
        %v989 = vsub.f32 %v477, %v733
        %v990 = vsub.f32 %v478, %v734
        %v991 = vsub.f32 %v479, %v735
        %v992 = vsub.f32 %v480, %v736
        %v993 = vsub.f32 %v481, %v737
        %v994 = vsub.f32 %v482, %v738
        %v995 = vsub.f32 %v483, %v739
        %v996 = vsub.f32 %v484, %v740
        %v997 = vsub.f32 %v485, %v741
        %v998 = vsub.f32 %v486, %v742
        %v999 = vsub.f32 %v487, %v743
        %v1000 = vsub.f32 %v488, %v744
        %v1001 = vsub.f32 %v489, %v745
        %v1002 = vsub.f32 %v490, %v746
        %v1003 = vsub.f32 %v491, %v747
        %v1004 = vsub.f32 %v492, %v748
        %v1005 = vsub.f32 %v493, %v749
        %v1006 = vsub.f32 %v494, %v750
        %v1007 = vsub.f32 %v495, %v751
        %v1008 = vsub.f32 %v496, %v752
        %v1009 = vsub.f32 %v497, %v753
        %v1010 = vsub.f32 %v498, %v754
        %v1011 = vsub.f32 %v499, %v755
        %v1012 = vsub.f32 %v500, %v756
        %v1013 = vsub.f32 %v501, %v757
        %v1014 = vsub.f32 %v502, %v758
        %v1015 = vsub.f32 %v503, %v759
        %v1016 = vsub.f32 %v504, %v760
        %v1017 = vsub.f32 %v505, %v761
        %v1018 = vsub.f32 %v506, %v762
        %v1019 = vsub.f32 %v507, %v763
        %v1020 = vsub.f32 %v508, %v764
        %v1021 = vsub.f32 %v509, %v765
        %v1022 = vsub.f32 %v510, %v766
        %v1023 = vsub.f32 %v511, %v767
        %v1024 = vsub.f32 %v512, %v768
        %v1025 = vsub.f32 %v513, %v769
        %v1026 = vsub.f32 %v514, %v770
        %v1027 = vsub.f32 %v515, %v771
        %v1028 = vsub.f32 %v516, %v772
        %v1029 = vsub.f32 %v517, %v773
        %v1030 = vsub.f32 %v518, %v774
        %v1031 = vsub.f32 %v519, %v775
        %v1032 = vsub.f32 %v520, %v776
        %v1033 = vsub.f32 %v521, %v777
        %v1034 = vsub.f32 %v522, %v778
        %v1035 = vsub.f32 %v523, %v779
        %v1036 = vsub.f32 %v524, %v780
        %v1037 = vsub.f32 %v525, %v781
        %v1038 = vsub.f32 %v526, %v782
        %v1039 = vsub.f32 %v527, %v783
        %v1040 = vsub.f32 %v528, %v784
        %v1041 = vsub.f32 %v529, %v785
        %v1042 = vsub.f32 %v530, %v786
        %v1043 = vsub.f32 %v531, %v787
        %v1044 = vsub.f32 %v532, %v788
        %v1045 = vsub.f32 %v533, %v789
        %v1046 = vsub.f32 %v534, %v790
        %v1047 = vsub.f32 %v535, %v791
        %v1048 = vsub.f32 %v536, %v792
        %v1049 = vsub.f32 %v537, %v793
        %v1050 = vsub.f32 %v538, %v794
        %v1051 = vsub.f32 %v539, %v795
        %v1052 = vsub.f32 %v540, %v796
        %v1053 = vsub.f32 %v541, %v797
        %v1054 = vsub.f32 %v542, %v798
        %v1055 = vsub.f32 %v543, %v799
        %v1056 = vsub.f32 %v544, %v800
        %v1057 = vsub.f32 %v545, %v801
        %v1058 = vsub.f32 %v546, %v802
        %v1059 = vsub.f32 %v547, %v803
        %v1060 = vsub.f32 %v548, %v804
        %v1061 = vsub.f32 %v549, %v805
        %v1062 = vsub.f32 %v550, %v806
        %v1063 = vsub.f32 %v551, %v807
        %v1064 = vsub.f32 %v552, %v808
        %v1065 = vsub.f32 %v553, %v809
        %v1066 = vsub.f32 %v554, %v810
        %v1067 = vsub.f32 %v555, %v811
        %v1068 = vsub.f32 %v556, %v812
        %v1069 = vsub.f32 %v557, %v813
        %v1070 = vsub.f32 %v558, %v814
        %v1071 = vsub.f32 %v559, %v815
        %v1072 = vsub.f32 %v560, %v816
        %v1073 = vsub.f32 %v561, %v817
        %v1074 = vsub.f32 %v562, %v818
        %v1075 = vsub.f32 %v563, %v819
        %v1076 = vsub.f32 %v564, %v820
        %v1077 = vsub.f32 %v565, %v821
        %v1078 = vsub.f32 %v566, %v822
        %v1079 = vsub.f32 %v567, %v823
        %v1080 = vsub.f32 %v568, %v824
        %v1081 = vsub.f32 %v569, %v825
        %v1082 = vsub.f32 %v570, %v826
        %v1083 = vsub.f32 %v571, %v827
        %v1084 = vsub.f32 %v572, %v828
        %v1085 = vsub.f32 %v573, %v829
        %v1086 = vsub.f32 %v574, %v830
        %v1087 = vsub.f32 %v575, %v831
        %v1088 = vsub.f32 %v576, %v832
        %v1089 = vmul.f32 %v833, %v833
        %v1090 = vmul.f32 %v834, %v834
        %v1091 = vmul.f32 %v835, %v835
        %v1092 = vmul.f32 %v836, %v836
        %v1093 = vmul.f32 %v837, %v837
        %v1094 = vmul.f32 %v838, %v838
        %v1095 = vmul.f32 %v839, %v839
        %v1096 = vmul.f32 %v840, %v840
        %v1097 = vmul.f32 %v841, %v841
        %v1098 = vmul.f32 %v842, %v842
        %v1099 = vmul.f32 %v843, %v843
        %v1100 = vmul.f32 %v844, %v844
        %v1101 = vmul.f32 %v845, %v845
        %v1102 = vmul.f32 %v846, %v846
        %v1103 = vmul.f32 %v847, %v847
        %v1104 = vmul.f32 %v848, %v848
        %v1105 = vmul.f32 %v849, %v849
        %v1106 = vmul.f32 %v850, %v850
        %v1107 = vmul.f32 %v851, %v851
        %v1108 = vmul.f32 %v852, %v852
        %v1109 = vmul.f32 %v853, %v853
        %v1110 = vmul.f32 %v854, %v854
        %v1111 = vmul.f32 %v855, %v855
        %v1112 = vmul.f32 %v856, %v856
        %v1113 = vmul.f32 %v857, %v857
        %v1114 = vmul.f32 %v858, %v858
        %v1115 = vmul.f32 %v859, %v859
        %v1116 = vmul.f32 %v860, %v860
        %v1117 = vmul.f32 %v861, %v861
        %v1118 = vmul.f32 %v862, %v862
        %v1119 = vmul.f32 %v863, %v863
        %v1120 = vmul.f32 %v864, %v864
        %v1121 = vmul.f32 %v865, %v865
        %v1122 = vmul.f32 %v866, %v866
        %v1123 = vmul.f32 %v867, %v867
        %v1124 = vmul.f32 %v868, %v868
        %v1125 = vmul.f32 %v869, %v869
        %v1126 = vmul.f32 %v870, %v870
        %v1127 = vmul.f32 %v871, %v871
        %v1128 = vmul.f32 %v872, %v872
        %v1129 = vmul.f32 %v873, %v873
        %v1130 = vmul.f32 %v874, %v874
        %v1131 = vmul.f32 %v875, %v875
        %v1132 = vmul.f32 %v876, %v876
        %v1133 = vmul.f32 %v877, %v877
        %v1134 = vmul.f32 %v878, %v878
        %v1135 = vmul.f32 %v879, %v879
        %v1136 = vmul.f32 %v880, %v880
        %v1137 = vmul.f32 %v881, %v881
        %v1138 = vmul.f32 %v882, %v882
        %v1139 = vmul.f32 %v883, %v883
        %v1140 = vmul.f32 %v884, %v884
        %v1141 = vmul.f32 %v885, %v885
        %v1142 = vmul.f32 %v886, %v886
        %v1143 = vmul.f32 %v887, %v887
        %v1144 = vmul.f32 %v888, %v888
        %v1145 = vmul.f32 %v889, %v889
        %v1146 = vmul.f32 %v890, %v890
        %v1147 = vmul.f32 %v891, %v891
        %v1148 = vmul.f32 %v892, %v892
        %v1149 = vmul.f32 %v893, %v893
        %v1150 = vmul.f32 %v894, %v894
        %v1151 = vmul.f32 %v895, %v895
        %v1152 = vmul.f32 %v896, %v896
        %v1153 = vmul.f32 %v897, %v897
        %v1154 = vmul.f32 %v898, %v898
        %v1155 = vmul.f32 %v899, %v899
        %v1156 = vmul.f32 %v900, %v900
        %v1157 = vmul.f32 %v901, %v901
        %v1158 = vmul.f32 %v902, %v902
        %v1159 = vmul.f32 %v903, %v903
        %v1160 = vmul.f32 %v904, %v904
        %v1161 = vmul.f32 %v905, %v905
        %v1162 = vmul.f32 %v906, %v906
        %v1163 = vmul.f32 %v907, %v907
        %v1164 = vmul.f32 %v908, %v908
        %v1165 = vmul.f32 %v909, %v909
        %v1166 = vmul.f32 %v910, %v910
        %v1167 = vmul.f32 %v911, %v911
        %v1168 = vmul.f32 %v912, %v912
        %v1169 = vmul.f32 %v913, %v913
        %v1170 = vmul.f32 %v914, %v914
        %v1171 = vmul.f32 %v915, %v915
        %v1172 = vmul.f32 %v916, %v916
        %v1173 = vmul.f32 %v917, %v917
        %v1174 = vmul.f32 %v918, %v918
        %v1175 = vmul.f32 %v919, %v919
        %v1176 = vmul.f32 %v920, %v920
        %v1177 = vmul.f32 %v921, %v921
        %v1178 = vmul.f32 %v922, %v922
        %v1179 = vmul.f32 %v923, %v923
        %v1180 = vmul.f32 %v924, %v924
        %v1181 = vmul.f32 %v925, %v925
        %v1182 = vmul.f32 %v926, %v926
        %v1183 = vmul.f32 %v927, %v927
        %v1184 = vmul.f32 %v928, %v928
        %v1185 = vmul.f32 %v929, %v929
        %v1186 = vmul.f32 %v930, %v930
        %v1187 = vmul.f32 %v931, %v931
        %v1188 = vmul.f32 %v932, %v932
        %v1189 = vmul.f32 %v933, %v933
        %v1190 = vmul.f32 %v934, %v934
        %v1191 = vmul.f32 %v935, %v935
        %v1192 = vmul.f32 %v936, %v936
        %v1193 = vmul.f32 %v937, %v937
        %v1194 = vmul.f32 %v938, %v938
        %v1195 = vmul.f32 %v939, %v939
        %v1196 = vmul.f32 %v940, %v940
        %v1197 = vmul.f32 %v941, %v941
        %v1198 = vmul.f32 %v942, %v942
        %v1199 = vmul.f32 %v943, %v943
        %v1200 = vmul.f32 %v944, %v944
        %v1201 = vmul.f32 %v945, %v945
        %v1202 = vmul.f32 %v946, %v946
        %v1203 = vmul.f32 %v947, %v947
        %v1204 = vmul.f32 %v948, %v948
        %v1205 = vmul.f32 %v949, %v949
        %v1206 = vmul.f32 %v950, %v950
        %v1207 = vmul.f32 %v951, %v951
        %v1208 = vmul.f32 %v952, %v952
        %v1209 = vmul.f32 %v953, %v953
        %v1210 = vmul.f32 %v954, %v954
        %v1211 = vmul.f32 %v955, %v955
        %v1212 = vmul.f32 %v956, %v956
        %v1213 = vmul.f32 %v957, %v957
        %v1214 = vmul.f32 %v958, %v958
        %v1215 = vmul.f32 %v959, %v959
        %v1216 = vmul.f32 %v960, %v960
        %v1217 = vmul.f32 %v961, %v961
        %v1218 = vmul.f32 %v962, %v962
        %v1219 = vmul.f32 %v963, %v963
        %v1220 = vmul.f32 %v964, %v964
        %v1221 = vmul.f32 %v965, %v965
        %v1222 = vmul.f32 %v966, %v966
        %v1223 = vmul.f32 %v967, %v967
        %v1224 = vmul.f32 %v968, %v968
        %v1225 = vmul.f32 %v969, %v969
        %v1226 = vmul.f32 %v970, %v970
        %v1227 = vmul.f32 %v971, %v971
        %v1228 = vmul.f32 %v972, %v972
        %v1229 = vmul.f32 %v973, %v973
        %v1230 = vmul.f32 %v974, %v974
        %v1231 = vmul.f32 %v975, %v975
        %v1232 = vmul.f32 %v976, %v976
        %v1233 = vmul.f32 %v977, %v977
        %v1234 = vmul.f32 %v978, %v978
        %v1235 = vmul.f32 %v979, %v979
        %v1236 = vmul.f32 %v980, %v980
        %v1237 = vmul.f32 %v981, %v981
        %v1238 = vmul.f32 %v982, %v982
        %v1239 = vmul.f32 %v983, %v983
        %v1240 = vmul.f32 %v984, %v984
        %v1241 = vmul.f32 %v985, %v985
        %v1242 = vmul.f32 %v986, %v986
        %v1243 = vmul.f32 %v987, %v987
        %v1244 = vmul.f32 %v988, %v988
        %v1245 = vmul.f32 %v989, %v989
        %v1246 = vmul.f32 %v990, %v990
        %v1247 = vmul.f32 %v991, %v991
        %v1248 = vmul.f32 %v992, %v992
        %v1249 = vmul.f32 %v993, %v993
        %v1250 = vmul.f32 %v994, %v994
        %v1251 = vmul.f32 %v995, %v995
        %v1252 = vmul.f32 %v996, %v996
        %v1253 = vmul.f32 %v997, %v997
        %v1254 = vmul.f32 %v998, %v998
        %v1255 = vmul.f32 %v999, %v999
        %v1256 = vmul.f32 %v1000, %v1000
        %v1257 = vmul.f32 %v1001, %v1001
        %v1258 = vmul.f32 %v1002, %v1002
        %v1259 = vmul.f32 %v1003, %v1003
        %v1260 = vmul.f32 %v1004, %v1004
        %v1261 = vmul.f32 %v1005, %v1005
        %v1262 = vmul.f32 %v1006, %v1006
        %v1263 = vmul.f32 %v1007, %v1007
        %v1264 = vmul.f32 %v1008, %v1008
        %v1265 = vmul.f32 %v1009, %v1009
        %v1266 = vmul.f32 %v1010, %v1010
        %v1267 = vmul.f32 %v1011, %v1011
        %v1268 = vmul.f32 %v1012, %v1012
        %v1269 = vmul.f32 %v1013, %v1013
        %v1270 = vmul.f32 %v1014, %v1014
        %v1271 = vmul.f32 %v1015, %v1015
        %v1272 = vmul.f32 %v1016, %v1016
        %v1273 = vmul.f32 %v1017, %v1017
        %v1274 = vmul.f32 %v1018, %v1018
        %v1275 = vmul.f32 %v1019, %v1019
        %v1276 = vmul.f32 %v1020, %v1020
        %v1277 = vmul.f32 %v1021, %v1021
        %v1278 = vmul.f32 %v1022, %v1022
        %v1279 = vmul.f32 %v1023, %v1023
        %v1280 = vmul.f32 %v1024, %v1024
        %v1281 = vmul.f32 %v1025, %v1025
        %v1282 = vmul.f32 %v1026, %v1026
        %v1283 = vmul.f32 %v1027, %v1027
        %v1284 = vmul.f32 %v1028, %v1028
        %v1285 = vmul.f32 %v1029, %v1029
        %v1286 = vmul.f32 %v1030, %v1030
        %v1287 = vmul.f32 %v1031, %v1031
        %v1288 = vmul.f32 %v1032, %v1032
        %v1289 = vmul.f32 %v1033, %v1033
        %v1290 = vmul.f32 %v1034, %v1034
        %v1291 = vmul.f32 %v1035, %v1035
        %v1292 = vmul.f32 %v1036, %v1036
        %v1293 = vmul.f32 %v1037, %v1037
        %v1294 = vmul.f32 %v1038, %v1038
        %v1295 = vmul.f32 %v1039, %v1039
        %v1296 = vmul.f32 %v1040, %v1040
        %v1297 = vmul.f32 %v1041, %v1041
        %v1298 = vmul.f32 %v1042, %v1042
        %v1299 = vmul.f32 %v1043, %v1043
        %v1300 = vmul.f32 %v1044, %v1044
        %v1301 = vmul.f32 %v1045, %v1045
        %v1302 = vmul.f32 %v1046, %v1046
        %v1303 = vmul.f32 %v1047, %v1047
        %v1304 = vmul.f32 %v1048, %v1048
        %v1305 = vmul.f32 %v1049, %v1049
        %v1306 = vmul.f32 %v1050, %v1050
        %v1307 = vmul.f32 %v1051, %v1051
        %v1308 = vmul.f32 %v1052, %v1052
        %v1309 = vmul.f32 %v1053, %v1053
        %v1310 = vmul.f32 %v1054, %v1054
        %v1311 = vmul.f32 %v1055, %v1055
        %v1312 = vmul.f32 %v1056, %v1056
        %v1313 = vmul.f32 %v1057, %v1057
        %v1314 = vmul.f32 %v1058, %v1058
        %v1315 = vmul.f32 %v1059, %v1059
        %v1316 = vmul.f32 %v1060, %v1060
        %v1317 = vmul.f32 %v1061, %v1061
        %v1318 = vmul.f32 %v1062, %v1062
        %v1319 = vmul.f32 %v1063, %v1063
        %v1320 = vmul.f32 %v1064, %v1064
        %v1321 = vmul.f32 %v1065, %v1065
        %v1322 = vmul.f32 %v1066, %v1066
        %v1323 = vmul.f32 %v1067, %v1067
        %v1324 = vmul.f32 %v1068, %v1068
        %v1325 = vmul.f32 %v1069, %v1069
        %v1326 = vmul.f32 %v1070, %v1070
        %v1327 = vmul.f32 %v1071, %v1071
        %v1328 = vmul.f32 %v1072, %v1072
        %v1329 = vmul.f32 %v1073, %v1073
        %v1330 = vmul.f32 %v1074, %v1074
        %v1331 = vmul.f32 %v1075, %v1075
        %v1332 = vmul.f32 %v1076, %v1076
        %v1333 = vmul.f32 %v1077, %v1077
        %v1334 = vmul.f32 %v1078, %v1078
        %v1335 = vmul.f32 %v1079, %v1079
        %v1336 = vmul.f32 %v1080, %v1080
        %v1337 = vmul.f32 %v1081, %v1081
        %v1338 = vmul.f32 %v1082, %v1082
        %v1339 = vmul.f32 %v1083, %v1083
        %v1340 = vmul.f32 %v1084, %v1084
        %v1341 = vmul.f32 %v1085, %v1085
        %v1342 = vmul.f32 %v1086, %v1086
        %v1343 = vmul.f32 %v1087, %v1087
        %v1344 = vmul.f32 %v1088, %v1088
        %v1345 = vadd.f32 %v1089, %v1097
        %v1346 = vadd.f32 %v1345, %v1105
        %v1347 = vadd.f32 %v1346, %v1113
        %v1348 = vrot.slane %v1347, 4
        %v1349 = vadd.f32 %v1347, %v1348
        %v1350 = vrot.slane %v1349, 2
        %v1351 = vadd.f32 %v1349, %v1350
        %v1352 = vrot.slane %v1351, 1
        %v1353 = vadd.f32 %v1351, %v1352
        %v1354 = vadd.f32 %v1090, %v1098
        %v1355 = vadd.f32 %v1354, %v1106
        %v1356 = vadd.f32 %v1355, %v1114
        %v1357 = vrot.slane %v1356, 4
        %v1358 = vadd.f32 %v1356, %v1357
        %v1359 = vrot.slane %v1358, 2
        %v1360 = vadd.f32 %v1358, %v1359
        %v1361 = vrot.slane %v1360, 1
        %v1362 = vadd.f32 %v1360, %v1361
        %v1363 = vadd.f32 %v1091, %v1099
        %v1364 = vadd.f32 %v1363, %v1107
        %v1365 = vadd.f32 %v1364, %v1115
        %v1366 = vrot.slane %v1365, 4
        %v1367 = vadd.f32 %v1365, %v1366
        %v1368 = vrot.slane %v1367, 2
        %v1369 = vadd.f32 %v1367, %v1368
        %v1370 = vrot.slane %v1369, 1
        %v1371 = vadd.f32 %v1369, %v1370
        %v1372 = vadd.f32 %v1092, %v1100
        %v1373 = vadd.f32 %v1372, %v1108
        %v1374 = vadd.f32 %v1373, %v1116
        %v1375 = vrot.slane %v1374, 4
        %v1376 = vadd.f32 %v1374, %v1375
        %v1377 = vrot.slane %v1376, 2
        %v1378 = vadd.f32 %v1376, %v1377
        %v1379 = vrot.slane %v1378, 1
        %v1380 = vadd.f32 %v1378, %v1379
        %v1381 = vadd.f32 %v1093, %v1101
        %v1382 = vadd.f32 %v1381, %v1109
        %v1383 = vadd.f32 %v1382, %v1117
        %v1384 = vrot.slane %v1383, 4
        %v1385 = vadd.f32 %v1383, %v1384
        %v1386 = vrot.slane %v1385, 2
        %v1387 = vadd.f32 %v1385, %v1386
        %v1388 = vrot.slane %v1387, 1
        %v1389 = vadd.f32 %v1387, %v1388
        %v1390 = vadd.f32 %v1094, %v1102
        %v1391 = vadd.f32 %v1390, %v1110
        %v1392 = vadd.f32 %v1391, %v1118
        %v1393 = vrot.slane %v1392, 4
        %v1394 = vadd.f32 %v1392, %v1393
        %v1395 = vrot.slane %v1394, 2
        %v1396 = vadd.f32 %v1394, %v1395
        %v1397 = vrot.slane %v1396, 1
        %v1398 = vadd.f32 %v1396, %v1397
        %v1399 = vadd.f32 %v1095, %v1103
        %v1400 = vadd.f32 %v1399, %v1111
        %v1401 = vadd.f32 %v1400, %v1119
        %v1402 = vrot.slane %v1401, 4
        %v1403 = vadd.f32 %v1401, %v1402
        %v1404 = vrot.slane %v1403, 2
        %v1405 = vadd.f32 %v1403, %v1404
        %v1406 = vrot.slane %v1405, 1
        %v1407 = vadd.f32 %v1405, %v1406
        %v1408 = vadd.f32 %v1096, %v1104
        %v1409 = vadd.f32 %v1408, %v1112
        %v1410 = vadd.f32 %v1409, %v1120
        %v1411 = vrot.slane %v1410, 4
        %v1412 = vadd.f32 %v1410, %v1411
        %v1413 = vrot.slane %v1412, 2
        %v1414 = vadd.f32 %v1412, %v1413
        %v1415 = vrot.slane %v1414, 1
        %v1416 = vadd.f32 %v1414, %v1415
        %v1417 = vadd.f32 %v1121, %v1129
        %v1418 = vadd.f32 %v1417, %v1137
        %v1419 = vadd.f32 %v1418, %v1145
        %v1420 = vrot.slane %v1419, 4
        %v1421 = vadd.f32 %v1419, %v1420
        %v1422 = vrot.slane %v1421, 2
        %v1423 = vadd.f32 %v1421, %v1422
        %v1424 = vrot.slane %v1423, 1
        %v1425 = vadd.f32 %v1423, %v1424
        %v1426 = vadd.f32 %v1122, %v1130
        %v1427 = vadd.f32 %v1426, %v1138
        %v1428 = vadd.f32 %v1427, %v1146
        %v1429 = vrot.slane %v1428, 4
        %v1430 = vadd.f32 %v1428, %v1429
        %v1431 = vrot.slane %v1430, 2
        %v1432 = vadd.f32 %v1430, %v1431
        %v1433 = vrot.slane %v1432, 1
        %v1434 = vadd.f32 %v1432, %v1433
        %v1435 = vadd.f32 %v1123, %v1131
        %v1436 = vadd.f32 %v1435, %v1139
        %v1437 = vadd.f32 %v1436, %v1147
        %v1438 = vrot.slane %v1437, 4
        %v1439 = vadd.f32 %v1437, %v1438
        %v1440 = vrot.slane %v1439, 2
        %v1441 = vadd.f32 %v1439, %v1440
        %v1442 = vrot.slane %v1441, 1
        %v1443 = vadd.f32 %v1441, %v1442
        %v1444 = vadd.f32 %v1124, %v1132
        %v1445 = vadd.f32 %v1444, %v1140
        %v1446 = vadd.f32 %v1445, %v1148
        %v1447 = vrot.slane %v1446, 4
        %v1448 = vadd.f32 %v1446, %v1447
        %v1449 = vrot.slane %v1448, 2
        %v1450 = vadd.f32 %v1448, %v1449
        %v1451 = vrot.slane %v1450, 1
        %v1452 = vadd.f32 %v1450, %v1451
        %v1453 = vadd.f32 %v1125, %v1133
        %v1454 = vadd.f32 %v1453, %v1141
        %v1455 = vadd.f32 %v1454, %v1149
        %v1456 = vrot.slane %v1455, 4
        %v1457 = vadd.f32 %v1455, %v1456
        %v1458 = vrot.slane %v1457, 2
        %v1459 = vadd.f32 %v1457, %v1458
        %v1460 = vrot.slane %v1459, 1
        %v1461 = vadd.f32 %v1459, %v1460
        %v1462 = vadd.f32 %v1126, %v1134
        %v1463 = vadd.f32 %v1462, %v1142
        %v1464 = vadd.f32 %v1463, %v1150
        %v1465 = vrot.slane %v1464, 4
        %v1466 = vadd.f32 %v1464, %v1465
        %v1467 = vrot.slane %v1466, 2
        %v1468 = vadd.f32 %v1466, %v1467
        %v1469 = vrot.slane %v1468, 1
        %v1470 = vadd.f32 %v1468, %v1469
        %v1471 = vadd.f32 %v1127, %v1135
        %v1472 = vadd.f32 %v1471, %v1143
        %v1473 = vadd.f32 %v1472, %v1151
        %v1474 = vrot.slane %v1473, 4
        %v1475 = vadd.f32 %v1473, %v1474
        %v1476 = vrot.slane %v1475, 2
        %v1477 = vadd.f32 %v1475, %v1476
        %v1478 = vrot.slane %v1477, 1
        %v1479 = vadd.f32 %v1477, %v1478
        %v1480 = vadd.f32 %v1128, %v1136
        %v1481 = vadd.f32 %v1480, %v1144
        %v1482 = vadd.f32 %v1481, %v1152
        %v1483 = vrot.slane %v1482, 4
        %v1484 = vadd.f32 %v1482, %v1483
        %v1485 = vrot.slane %v1484, 2
        %v1486 = vadd.f32 %v1484, %v1485
        %v1487 = vrot.slane %v1486, 1
        %v1488 = vadd.f32 %v1486, %v1487
        %v1489 = vadd.f32 %v1153, %v1161
        %v1490 = vadd.f32 %v1489, %v1169
        %v1491 = vadd.f32 %v1490, %v1177
        %v1492 = vrot.slane %v1491, 4
        %v1493 = vadd.f32 %v1491, %v1492
        %v1494 = vrot.slane %v1493, 2
        %v1495 = vadd.f32 %v1493, %v1494
        %v1496 = vrot.slane %v1495, 1
        %v1497 = vadd.f32 %v1495, %v1496
        %v1498 = vadd.f32 %v1154, %v1162
        %v1499 = vadd.f32 %v1498, %v1170
        %v1500 = vadd.f32 %v1499, %v1178
        %v1501 = vrot.slane %v1500, 4
        %v1502 = vadd.f32 %v1500, %v1501
        %v1503 = vrot.slane %v1502, 2
        %v1504 = vadd.f32 %v1502, %v1503
        %v1505 = vrot.slane %v1504, 1
        %v1506 = vadd.f32 %v1504, %v1505
        %v1507 = vadd.f32 %v1155, %v1163
        %v1508 = vadd.f32 %v1507, %v1171
        %v1509 = vadd.f32 %v1508, %v1179
        %v1510 = vrot.slane %v1509, 4
        %v1511 = vadd.f32 %v1509, %v1510
        %v1512 = vrot.slane %v1511, 2
        %v1513 = vadd.f32 %v1511, %v1512
        %v1514 = vrot.slane %v1513, 1
        %v1515 = vadd.f32 %v1513, %v1514
        %v1516 = vadd.f32 %v1156, %v1164
        %v1517 = vadd.f32 %v1516, %v1172
        %v1518 = vadd.f32 %v1517, %v1180
        %v1519 = vrot.slane %v1518, 4
        %v1520 = vadd.f32 %v1518, %v1519
        %v1521 = vrot.slane %v1520, 2
        %v1522 = vadd.f32 %v1520, %v1521
        %v1523 = vrot.slane %v1522, 1
        %v1524 = vadd.f32 %v1522, %v1523
        %v1525 = vadd.f32 %v1157, %v1165
        %v1526 = vadd.f32 %v1525, %v1173
        %v1527 = vadd.f32 %v1526, %v1181
        %v1528 = vrot.slane %v1527, 4
        %v1529 = vadd.f32 %v1527, %v1528
        %v1530 = vrot.slane %v1529, 2
        %v1531 = vadd.f32 %v1529, %v1530
        %v1532 = vrot.slane %v1531, 1
        %v1533 = vadd.f32 %v1531, %v1532
        %v1534 = vadd.f32 %v1158, %v1166
        %v1535 = vadd.f32 %v1534, %v1174
        %v1536 = vadd.f32 %v1535, %v1182
        %v1537 = vrot.slane %v1536, 4
        %v1538 = vadd.f32 %v1536, %v1537
        %v1539 = vrot.slane %v1538, 2
        %v1540 = vadd.f32 %v1538, %v1539
        %v1541 = vrot.slane %v1540, 1
        %v1542 = vadd.f32 %v1540, %v1541
        %v1543 = vadd.f32 %v1159, %v1167
        %v1544 = vadd.f32 %v1543, %v1175
        %v1545 = vadd.f32 %v1544, %v1183
        %v1546 = vrot.slane %v1545, 4
        %v1547 = vadd.f32 %v1545, %v1546
        %v1548 = vrot.slane %v1547, 2
        %v1549 = vadd.f32 %v1547, %v1548
        %v1550 = vrot.slane %v1549, 1
        %v1551 = vadd.f32 %v1549, %v1550
        %v1552 = vadd.f32 %v1160, %v1168
        %v1553 = vadd.f32 %v1552, %v1176
        %v1554 = vadd.f32 %v1553, %v1184
        %v1555 = vrot.slane %v1554, 4
        %v1556 = vadd.f32 %v1554, %v1555
        %v1557 = vrot.slane %v1556, 2
        %v1558 = vadd.f32 %v1556, %v1557
        %v1559 = vrot.slane %v1558, 1
        %v1560 = vadd.f32 %v1558, %v1559
        %v1561 = vadd.f32 %v1185, %v1193
        %v1562 = vadd.f32 %v1561, %v1201
        %v1563 = vadd.f32 %v1562, %v1209
        %v1564 = vrot.slane %v1563, 4
        %v1565 = vadd.f32 %v1563, %v1564
        %v1566 = vrot.slane %v1565, 2
        %v1567 = vadd.f32 %v1565, %v1566
        %v1568 = vrot.slane %v1567, 1
        %v1569 = vadd.f32 %v1567, %v1568
        %v1570 = vadd.f32 %v1186, %v1194
        %v1571 = vadd.f32 %v1570, %v1202
        %v1572 = vadd.f32 %v1571, %v1210
        %v1573 = vrot.slane %v1572, 4
        %v1574 = vadd.f32 %v1572, %v1573
        %v1575 = vrot.slane %v1574, 2
        %v1576 = vadd.f32 %v1574, %v1575
        %v1577 = vrot.slane %v1576, 1
        %v1578 = vadd.f32 %v1576, %v1577
        %v1579 = vadd.f32 %v1187, %v1195
        %v1580 = vadd.f32 %v1579, %v1203
        %v1581 = vadd.f32 %v1580, %v1211
        %v1582 = vrot.slane %v1581, 4
        %v1583 = vadd.f32 %v1581, %v1582
        %v1584 = vrot.slane %v1583, 2
        %v1585 = vadd.f32 %v1583, %v1584
        %v1586 = vrot.slane %v1585, 1
        %v1587 = vadd.f32 %v1585, %v1586
        %v1588 = vadd.f32 %v1188, %v1196
        %v1589 = vadd.f32 %v1588, %v1204
        %v1590 = vadd.f32 %v1589, %v1212
        %v1591 = vrot.slane %v1590, 4
        %v1592 = vadd.f32 %v1590, %v1591
        %v1593 = vrot.slane %v1592, 2
        %v1594 = vadd.f32 %v1592, %v1593
        %v1595 = vrot.slane %v1594, 1
        %v1596 = vadd.f32 %v1594, %v1595
        %v1597 = vadd.f32 %v1189, %v1197
        %v1598 = vadd.f32 %v1597, %v1205
        %v1599 = vadd.f32 %v1598, %v1213
        %v1600 = vrot.slane %v1599, 4
        %v1601 = vadd.f32 %v1599, %v1600
        %v1602 = vrot.slane %v1601, 2
        %v1603 = vadd.f32 %v1601, %v1602
        %v1604 = vrot.slane %v1603, 1
        %v1605 = vadd.f32 %v1603, %v1604
        %v1606 = vadd.f32 %v1190, %v1198
        %v1607 = vadd.f32 %v1606, %v1206
        %v1608 = vadd.f32 %v1607, %v1214
        %v1609 = vrot.slane %v1608, 4
        %v1610 = vadd.f32 %v1608, %v1609
        %v1611 = vrot.slane %v1610, 2
        %v1612 = vadd.f32 %v1610, %v1611
        %v1613 = vrot.slane %v1612, 1
        %v1614 = vadd.f32 %v1612, %v1613
        %v1615 = vadd.f32 %v1191, %v1199
        %v1616 = vadd.f32 %v1615, %v1207
        %v1617 = vadd.f32 %v1616, %v1215
        %v1618 = vrot.slane %v1617, 4
        %v1619 = vadd.f32 %v1617, %v1618
        %v1620 = vrot.slane %v1619, 2
        %v1621 = vadd.f32 %v1619, %v1620
        %v1622 = vrot.slane %v1621, 1
        %v1623 = vadd.f32 %v1621, %v1622
        %v1624 = vadd.f32 %v1192, %v1200
        %v1625 = vadd.f32 %v1624, %v1208
        %v1626 = vadd.f32 %v1625, %v1216
        %v1627 = vrot.slane %v1626, 4
        %v1628 = vadd.f32 %v1626, %v1627
        %v1629 = vrot.slane %v1628, 2
        %v1630 = vadd.f32 %v1628, %v1629
        %v1631 = vrot.slane %v1630, 1
        %v1632 = vadd.f32 %v1630, %v1631
        %v1633 = vadd.f32 %v1217, %v1225
        %v1634 = vadd.f32 %v1633, %v1233
        %v1635 = vadd.f32 %v1634, %v1241
        %v1636 = vrot.slane %v1635, 4
        %v1637 = vadd.f32 %v1635, %v1636
        %v1638 = vrot.slane %v1637, 2
        %v1639 = vadd.f32 %v1637, %v1638
        %v1640 = vrot.slane %v1639, 1
        %v1641 = vadd.f32 %v1639, %v1640
        %v1642 = vadd.f32 %v1218, %v1226
        %v1643 = vadd.f32 %v1642, %v1234
        %v1644 = vadd.f32 %v1643, %v1242
        %v1645 = vrot.slane %v1644, 4
        %v1646 = vadd.f32 %v1644, %v1645
        %v1647 = vrot.slane %v1646, 2
        %v1648 = vadd.f32 %v1646, %v1647
        %v1649 = vrot.slane %v1648, 1
        %v1650 = vadd.f32 %v1648, %v1649
        %v1651 = vadd.f32 %v1219, %v1227
        %v1652 = vadd.f32 %v1651, %v1235
        %v1653 = vadd.f32 %v1652, %v1243
        %v1654 = vrot.slane %v1653, 4
        %v1655 = vadd.f32 %v1653, %v1654
        %v1656 = vrot.slane %v1655, 2
        %v1657 = vadd.f32 %v1655, %v1656
        %v1658 = vrot.slane %v1657, 1
        %v1659 = vadd.f32 %v1657, %v1658
        %v1660 = vadd.f32 %v1220, %v1228
        %v1661 = vadd.f32 %v1660, %v1236
        %v1662 = vadd.f32 %v1661, %v1244
        %v1663 = vrot.slane %v1662, 4
        %v1664 = vadd.f32 %v1662, %v1663
        %v1665 = vrot.slane %v1664, 2
        %v1666 = vadd.f32 %v1664, %v1665
        %v1667 = vrot.slane %v1666, 1
        %v1668 = vadd.f32 %v1666, %v1667
        %v1669 = vadd.f32 %v1221, %v1229
        %v1670 = vadd.f32 %v1669, %v1237
        %v1671 = vadd.f32 %v1670, %v1245
        %v1672 = vrot.slane %v1671, 4
        %v1673 = vadd.f32 %v1671, %v1672
        %v1674 = vrot.slane %v1673, 2
        %v1675 = vadd.f32 %v1673, %v1674
        %v1676 = vrot.slane %v1675, 1
        %v1677 = vadd.f32 %v1675, %v1676
        %v1678 = vadd.f32 %v1222, %v1230
        %v1679 = vadd.f32 %v1678, %v1238
        %v1680 = vadd.f32 %v1679, %v1246
        %v1681 = vrot.slane %v1680, 4
        %v1682 = vadd.f32 %v1680, %v1681
        %v1683 = vrot.slane %v1682, 2
        %v1684 = vadd.f32 %v1682, %v1683
        %v1685 = vrot.slane %v1684, 1
        %v1686 = vadd.f32 %v1684, %v1685
        %v1687 = vadd.f32 %v1223, %v1231
        %v1688 = vadd.f32 %v1687, %v1239
        %v1689 = vadd.f32 %v1688, %v1247
        %v1690 = vrot.slane %v1689, 4
        %v1691 = vadd.f32 %v1689, %v1690
        %v1692 = vrot.slane %v1691, 2
        %v1693 = vadd.f32 %v1691, %v1692
        %v1694 = vrot.slane %v1693, 1
        %v1695 = vadd.f32 %v1693, %v1694
        %v1696 = vadd.f32 %v1224, %v1232
        %v1697 = vadd.f32 %v1696, %v1240
        %v1698 = vadd.f32 %v1697, %v1248
        %v1699 = vrot.slane %v1698, 4
        %v1700 = vadd.f32 %v1698, %v1699
        %v1701 = vrot.slane %v1700, 2
        %v1702 = vadd.f32 %v1700, %v1701
        %v1703 = vrot.slane %v1702, 1
        %v1704 = vadd.f32 %v1702, %v1703
        %v1705 = vadd.f32 %v1249, %v1257
        %v1706 = vadd.f32 %v1705, %v1265
        %v1707 = vadd.f32 %v1706, %v1273
        %v1708 = vrot.slane %v1707, 4
        %v1709 = vadd.f32 %v1707, %v1708
        %v1710 = vrot.slane %v1709, 2
        %v1711 = vadd.f32 %v1709, %v1710
        %v1712 = vrot.slane %v1711, 1
        %v1713 = vadd.f32 %v1711, %v1712
        %v1714 = vadd.f32 %v1250, %v1258
        %v1715 = vadd.f32 %v1714, %v1266
        %v1716 = vadd.f32 %v1715, %v1274
        %v1717 = vrot.slane %v1716, 4
        %v1718 = vadd.f32 %v1716, %v1717
        %v1719 = vrot.slane %v1718, 2
        %v1720 = vadd.f32 %v1718, %v1719
        %v1721 = vrot.slane %v1720, 1
        %v1722 = vadd.f32 %v1720, %v1721
        %v1723 = vadd.f32 %v1251, %v1259
        %v1724 = vadd.f32 %v1723, %v1267
        %v1725 = vadd.f32 %v1724, %v1275
        %v1726 = vrot.slane %v1725, 4
        %v1727 = vadd.f32 %v1725, %v1726
        %v1728 = vrot.slane %v1727, 2
        %v1729 = vadd.f32 %v1727, %v1728
        %v1730 = vrot.slane %v1729, 1
        %v1731 = vadd.f32 %v1729, %v1730
        %v1732 = vadd.f32 %v1252, %v1260
        %v1733 = vadd.f32 %v1732, %v1268
        %v1734 = vadd.f32 %v1733, %v1276
        %v1735 = vrot.slane %v1734, 4
        %v1736 = vadd.f32 %v1734, %v1735
        %v1737 = vrot.slane %v1736, 2
        %v1738 = vadd.f32 %v1736, %v1737
        %v1739 = vrot.slane %v1738, 1
        %v1740 = vadd.f32 %v1738, %v1739
        %v1741 = vadd.f32 %v1253, %v1261
        %v1742 = vadd.f32 %v1741, %v1269
        %v1743 = vadd.f32 %v1742, %v1277
        %v1744 = vrot.slane %v1743, 4
        %v1745 = vadd.f32 %v1743, %v1744
        %v1746 = vrot.slane %v1745, 2
        %v1747 = vadd.f32 %v1745, %v1746
        %v1748 = vrot.slane %v1747, 1
        %v1749 = vadd.f32 %v1747, %v1748
        %v1750 = vadd.f32 %v1254, %v1262
        %v1751 = vadd.f32 %v1750, %v1270
        %v1752 = vadd.f32 %v1751, %v1278
        %v1753 = vrot.slane %v1752, 4
        %v1754 = vadd.f32 %v1752, %v1753
        %v1755 = vrot.slane %v1754, 2
        %v1756 = vadd.f32 %v1754, %v1755
        %v1757 = vrot.slane %v1756, 1
        %v1758 = vadd.f32 %v1756, %v1757
        %v1759 = vadd.f32 %v1255, %v1263
        %v1760 = vadd.f32 %v1759, %v1271
        %v1761 = vadd.f32 %v1760, %v1279
        %v1762 = vrot.slane %v1761, 4
        %v1763 = vadd.f32 %v1761, %v1762
        %v1764 = vrot.slane %v1763, 2
        %v1765 = vadd.f32 %v1763, %v1764
        %v1766 = vrot.slane %v1765, 1
        %v1767 = vadd.f32 %v1765, %v1766
        %v1768 = vadd.f32 %v1256, %v1264
        %v1769 = vadd.f32 %v1768, %v1272
        %v1770 = vadd.f32 %v1769, %v1280
        %v1771 = vrot.slane %v1770, 4
        %v1772 = vadd.f32 %v1770, %v1771
        %v1773 = vrot.slane %v1772, 2
        %v1774 = vadd.f32 %v1772, %v1773
        %v1775 = vrot.slane %v1774, 1
        %v1776 = vadd.f32 %v1774, %v1775
        %v1777 = vadd.f32 %v1281, %v1289
        %v1778 = vadd.f32 %v1777, %v1297
        %v1779 = vadd.f32 %v1778, %v1305
        %v1780 = vrot.slane %v1779, 4
        %v1781 = vadd.f32 %v1779, %v1780
        %v1782 = vrot.slane %v1781, 2
        %v1783 = vadd.f32 %v1781, %v1782
        %v1784 = vrot.slane %v1783, 1
        %v1785 = vadd.f32 %v1783, %v1784
        %v1786 = vadd.f32 %v1282, %v1290
        %v1787 = vadd.f32 %v1786, %v1298
        %v1788 = vadd.f32 %v1787, %v1306
        %v1789 = vrot.slane %v1788, 4
        %v1790 = vadd.f32 %v1788, %v1789
        %v1791 = vrot.slane %v1790, 2
        %v1792 = vadd.f32 %v1790, %v1791
        %v1793 = vrot.slane %v1792, 1
        %v1794 = vadd.f32 %v1792, %v1793
        %v1795 = vadd.f32 %v1283, %v1291
        %v1796 = vadd.f32 %v1795, %v1299
        %v1797 = vadd.f32 %v1796, %v1307
        %v1798 = vrot.slane %v1797, 4
        %v1799 = vadd.f32 %v1797, %v1798
        %v1800 = vrot.slane %v1799, 2
        %v1801 = vadd.f32 %v1799, %v1800
        %v1802 = vrot.slane %v1801, 1
        %v1803 = vadd.f32 %v1801, %v1802
        %v1804 = vadd.f32 %v1284, %v1292
        %v1805 = vadd.f32 %v1804, %v1300
        %v1806 = vadd.f32 %v1805, %v1308
        %v1807 = vrot.slane %v1806, 4
        %v1808 = vadd.f32 %v1806, %v1807
        %v1809 = vrot.slane %v1808, 2
        %v1810 = vadd.f32 %v1808, %v1809
        %v1811 = vrot.slane %v1810, 1
        %v1812 = vadd.f32 %v1810, %v1811
        %v1813 = vadd.f32 %v1285, %v1293
        %v1814 = vadd.f32 %v1813, %v1301
        %v1815 = vadd.f32 %v1814, %v1309
        %v1816 = vrot.slane %v1815, 4
        %v1817 = vadd.f32 %v1815, %v1816
        %v1818 = vrot.slane %v1817, 2
        %v1819 = vadd.f32 %v1817, %v1818
        %v1820 = vrot.slane %v1819, 1
        %v1821 = vadd.f32 %v1819, %v1820
        %v1822 = vadd.f32 %v1286, %v1294
        %v1823 = vadd.f32 %v1822, %v1302
        %v1824 = vadd.f32 %v1823, %v1310
        %v1825 = vrot.slane %v1824, 4
        %v1826 = vadd.f32 %v1824, %v1825
        %v1827 = vrot.slane %v1826, 2
        %v1828 = vadd.f32 %v1826, %v1827
        %v1829 = vrot.slane %v1828, 1
        %v1830 = vadd.f32 %v1828, %v1829
        %v1831 = vadd.f32 %v1287, %v1295
        %v1832 = vadd.f32 %v1831, %v1303
        %v1833 = vadd.f32 %v1832, %v1311
        %v1834 = vrot.slane %v1833, 4
        %v1835 = vadd.f32 %v1833, %v1834
        %v1836 = vrot.slane %v1835, 2
        %v1837 = vadd.f32 %v1835, %v1836
        %v1838 = vrot.slane %v1837, 1
        %v1839 = vadd.f32 %v1837, %v1838
        %v1840 = vadd.f32 %v1288, %v1296
        %v1841 = vadd.f32 %v1840, %v1304
        %v1842 = vadd.f32 %v1841, %v1312
        %v1843 = vrot.slane %v1842, 4
        %v1844 = vadd.f32 %v1842, %v1843
        %v1845 = vrot.slane %v1844, 2
        %v1846 = vadd.f32 %v1844, %v1845
        %v1847 = vrot.slane %v1846, 1
        %v1848 = vadd.f32 %v1846, %v1847
        %v1849 = vadd.f32 %v1313, %v1321
        %v1850 = vadd.f32 %v1849, %v1329
        %v1851 = vadd.f32 %v1850, %v1337
        %v1852 = vrot.slane %v1851, 4
        %v1853 = vadd.f32 %v1851, %v1852
        %v1854 = vrot.slane %v1853, 2
        %v1855 = vadd.f32 %v1853, %v1854
        %v1856 = vrot.slane %v1855, 1
        %v1857 = vadd.f32 %v1855, %v1856
        %v1858 = vadd.f32 %v1314, %v1322
        %v1859 = vadd.f32 %v1858, %v1330
        %v1860 = vadd.f32 %v1859, %v1338
        %v1861 = vrot.slane %v1860, 4
        %v1862 = vadd.f32 %v1860, %v1861
        %v1863 = vrot.slane %v1862, 2
        %v1864 = vadd.f32 %v1862, %v1863
        %v1865 = vrot.slane %v1864, 1
        %v1866 = vadd.f32 %v1864, %v1865
        %v1867 = vadd.f32 %v1315, %v1323
        %v1868 = vadd.f32 %v1867, %v1331
        %v1869 = vadd.f32 %v1868, %v1339
        %v1870 = vrot.slane %v1869, 4
        %v1871 = vadd.f32 %v1869, %v1870
        %v1872 = vrot.slane %v1871, 2
        %v1873 = vadd.f32 %v1871, %v1872
        %v1874 = vrot.slane %v1873, 1
        %v1875 = vadd.f32 %v1873, %v1874
        %v1876 = vadd.f32 %v1316, %v1324
        %v1877 = vadd.f32 %v1876, %v1332
        %v1878 = vadd.f32 %v1877, %v1340
        %v1879 = vrot.slane %v1878, 4
        %v1880 = vadd.f32 %v1878, %v1879
        %v1881 = vrot.slane %v1880, 2
        %v1882 = vadd.f32 %v1880, %v1881
        %v1883 = vrot.slane %v1882, 1
        %v1884 = vadd.f32 %v1882, %v1883
        %v1885 = vadd.f32 %v1317, %v1325
        %v1886 = vadd.f32 %v1885, %v1333
        %v1887 = vadd.f32 %v1886, %v1341
        %v1888 = vrot.slane %v1887, 4
        %v1889 = vadd.f32 %v1887, %v1888
        %v1890 = vrot.slane %v1889, 2
        %v1891 = vadd.f32 %v1889, %v1890
        %v1892 = vrot.slane %v1891, 1
        %v1893 = vadd.f32 %v1891, %v1892
        %v1894 = vadd.f32 %v1318, %v1326
        %v1895 = vadd.f32 %v1894, %v1334
        %v1896 = vadd.f32 %v1895, %v1342
        %v1897 = vrot.slane %v1896, 4
        %v1898 = vadd.f32 %v1896, %v1897
        %v1899 = vrot.slane %v1898, 2
        %v1900 = vadd.f32 %v1898, %v1899
        %v1901 = vrot.slane %v1900, 1
        %v1902 = vadd.f32 %v1900, %v1901
        %v1903 = vadd.f32 %v1319, %v1327
        %v1904 = vadd.f32 %v1903, %v1335
        %v1905 = vadd.f32 %v1904, %v1343
        %v1906 = vrot.slane %v1905, 4
        %v1907 = vadd.f32 %v1905, %v1906
        %v1908 = vrot.slane %v1907, 2
        %v1909 = vadd.f32 %v1907, %v1908
        %v1910 = vrot.slane %v1909, 1
        %v1911 = vadd.f32 %v1909, %v1910
        %v1912 = vadd.f32 %v1320, %v1328
        %v1913 = vadd.f32 %v1912, %v1336
        %v1914 = vadd.f32 %v1913, %v1344
        %v1915 = vrot.slane %v1914, 4
        %v1916 = vadd.f32 %v1914, %v1915
        %v1917 = vrot.slane %v1916, 2
        %v1918 = vadd.f32 %v1916, %v1917
        %v1919 = vrot.slane %v1918, 1
        %v1920 = vadd.f32 %v1918, %v1919
        %v1921 = vrsqrt.pop %v1353
        %v1922 = vmul.f32 %v1353, %v1921
        %vm1923 = vcmp.eq.f32.partialorder %v1353, inf
        %v1924 = vsel %vm1923, %v1353, %v1922
        %vm1925 = vcmp.eq.f32.partialorder %v1353, 0.0
        %v1926 = vand.u32 %v1353, 2147483648
        %v1927 = vsel %vm1925, %v1926, %v1924
        %v1928 = vrsqrt.pop %v1362
        %v1929 = vmul.f32 %v1362, %v1928
        %vm1930 = vcmp.eq.f32.partialorder %v1362, inf
        %v1931 = vsel %vm1930, %v1362, %v1929
        %vm1932 = vcmp.eq.f32.partialorder %v1362, 0.0
        %v1933 = vand.u32 %v1362, 2147483648
        %v1934 = vsel %vm1932, %v1933, %v1931
        %v1935 = vrsqrt.pop %v1371
        %v1936 = vmul.f32 %v1371, %v1935
        %vm1937 = vcmp.eq.f32.partialorder %v1371, inf
        %v1938 = vsel %vm1937, %v1371, %v1936
        %vm1939 = vcmp.eq.f32.partialorder %v1371, 0.0
        %v1940 = vand.u32 %v1371, 2147483648
        %v1941 = vsel %vm1939, %v1940, %v1938
        %v1942 = vrsqrt.pop %v1380
        %v1943 = vmul.f32 %v1380, %v1942
        %vm1944 = vcmp.eq.f32.partialorder %v1380, inf
        %v1945 = vsel %vm1944, %v1380, %v1943
        %vm1946 = vcmp.eq.f32.partialorder %v1380, 0.0
        %v1947 = vand.u32 %v1380, 2147483648
        %v1948 = vsel %vm1946, %v1947, %v1945
        %v1949 = vrsqrt.pop %v1389
        %v1950 = vmul.f32 %v1389, %v1949
        %vm1951 = vcmp.eq.f32.partialorder %v1389, inf
        %v1952 = vsel %vm1951, %v1389, %v1950
        %vm1953 = vcmp.eq.f32.partialorder %v1389, 0.0
        %v1954 = vand.u32 %v1389, 2147483648
        %v1955 = vsel %vm1953, %v1954, %v1952
        %v1956 = vrsqrt.pop %v1398
        %v1957 = vmul.f32 %v1398, %v1956
        %vm1958 = vcmp.eq.f32.partialorder %v1398, inf
        %v1959 = vsel %vm1958, %v1398, %v1957
        %vm1960 = vcmp.eq.f32.partialorder %v1398, 0.0
        %v1961 = vand.u32 %v1398, 2147483648
        %v1962 = vsel %vm1960, %v1961, %v1959
        %v1963 = vrsqrt.pop %v1407
        %v1964 = vmul.f32 %v1407, %v1963
        %vm1965 = vcmp.eq.f32.partialorder %v1407, inf
        %v1966 = vsel %vm1965, %v1407, %v1964
        %vm1967 = vcmp.eq.f32.partialorder %v1407, 0.0
        %v1968 = vand.u32 %v1407, 2147483648
        %v1969 = vsel %vm1967, %v1968, %v1966
        %v1970 = vrsqrt.pop %v1416
        %v1971 = vmul.f32 %v1416, %v1970
        %vm1972 = vcmp.eq.f32.partialorder %v1416, inf
        %v1973 = vsel %vm1972, %v1416, %v1971
        %vm1974 = vcmp.eq.f32.partialorder %v1416, 0.0
        %v1975 = vand.u32 %v1416, 2147483648
        %v1976 = vsel %vm1974, %v1975, %v1973
        %v1977 = vrsqrt.pop %v1425
        %v1978 = vmul.f32 %v1425, %v1977
        %vm1979 = vcmp.eq.f32.partialorder %v1425, inf
        %v1980 = vsel %vm1979, %v1425, %v1978
        %vm1981 = vcmp.eq.f32.partialorder %v1425, 0.0
        %v1982 = vand.u32 %v1425, 2147483648
        %v1983 = vsel %vm1981, %v1982, %v1980
        %v1984 = vrsqrt.pop %v1434
        %v1985 = vmul.f32 %v1434, %v1984
        %vm1986 = vcmp.eq.f32.partialorder %v1434, inf
        %v1987 = vsel %vm1986, %v1434, %v1985
        %vm1988 = vcmp.eq.f32.partialorder %v1434, 0.0
        %v1989 = vand.u32 %v1434, 2147483648
        %v1990 = vsel %vm1988, %v1989, %v1987
        %v1991 = vrsqrt.pop %v1443
        %v1992 = vmul.f32 %v1443, %v1991
        %vm1993 = vcmp.eq.f32.partialorder %v1443, inf
        %v1994 = vsel %vm1993, %v1443, %v1992
        %vm1995 = vcmp.eq.f32.partialorder %v1443, 0.0
        %v1996 = vand.u32 %v1443, 2147483648
        %v1997 = vsel %vm1995, %v1996, %v1994
        %v1998 = vrsqrt.pop %v1452
        %v1999 = vmul.f32 %v1452, %v1998
        %vm2000 = vcmp.eq.f32.partialorder %v1452, inf
        %v2001 = vsel %vm2000, %v1452, %v1999
        %vm2002 = vcmp.eq.f32.partialorder %v1452, 0.0
        %v2003 = vand.u32 %v1452, 2147483648
        %v2004 = vsel %vm2002, %v2003, %v2001
        %v2005 = vrsqrt.pop %v1461
        %v2006 = vmul.f32 %v1461, %v2005
        %vm2007 = vcmp.eq.f32.partialorder %v1461, inf
        %v2008 = vsel %vm2007, %v1461, %v2006
        %vm2009 = vcmp.eq.f32.partialorder %v1461, 0.0
        %v2010 = vand.u32 %v1461, 2147483648
        %v2011 = vsel %vm2009, %v2010, %v2008
        %v2012 = vrsqrt.pop %v1470
        %v2013 = vmul.f32 %v1470, %v2012
        %vm2014 = vcmp.eq.f32.partialorder %v1470, inf
        %v2015 = vsel %vm2014, %v1470, %v2013
        %vm2016 = vcmp.eq.f32.partialorder %v1470, 0.0
        %v2017 = vand.u32 %v1470, 2147483648
        %v2018 = vsel %vm2016, %v2017, %v2015
        %v2019 = vrsqrt.pop %v1479
        %v2020 = vmul.f32 %v1479, %v2019
        %vm2021 = vcmp.eq.f32.partialorder %v1479, inf
        %v2022 = vsel %vm2021, %v1479, %v2020
        %vm2023 = vcmp.eq.f32.partialorder %v1479, 0.0
        %v2024 = vand.u32 %v1479, 2147483648
        %v2025 = vsel %vm2023, %v2024, %v2022
        %v2026 = vrsqrt.pop %v1488
        %v2027 = vmul.f32 %v1488, %v2026
        %vm2028 = vcmp.eq.f32.partialorder %v1488, inf
        %v2029 = vsel %vm2028, %v1488, %v2027
        %vm2030 = vcmp.eq.f32.partialorder %v1488, 0.0
        %v2031 = vand.u32 %v1488, 2147483648
        %v2032 = vsel %vm2030, %v2031, %v2029
        %v2033 = vrsqrt.pop %v1497
        %v2034 = vmul.f32 %v1497, %v2033
        %vm2035 = vcmp.eq.f32.partialorder %v1497, inf
        %v2036 = vsel %vm2035, %v1497, %v2034
        %vm2037 = vcmp.eq.f32.partialorder %v1497, 0.0
        %v2038 = vand.u32 %v1497, 2147483648
        %v2039 = vsel %vm2037, %v2038, %v2036
        %v2040 = vrsqrt.pop %v1506
        %v2041 = vmul.f32 %v1506, %v2040
        %vm2042 = vcmp.eq.f32.partialorder %v1506, inf
        %v2043 = vsel %vm2042, %v1506, %v2041
        %vm2044 = vcmp.eq.f32.partialorder %v1506, 0.0
        %v2045 = vand.u32 %v1506, 2147483648
        %v2046 = vsel %vm2044, %v2045, %v2043
        %v2047 = vrsqrt.pop %v1515
        %v2048 = vmul.f32 %v1515, %v2047
        %vm2049 = vcmp.eq.f32.partialorder %v1515, inf
        %v2050 = vsel %vm2049, %v1515, %v2048
        %vm2051 = vcmp.eq.f32.partialorder %v1515, 0.0
        %v2052 = vand.u32 %v1515, 2147483648
        %v2053 = vsel %vm2051, %v2052, %v2050
        %v2054 = vrsqrt.pop %v1524
        %v2055 = vmul.f32 %v1524, %v2054
        %vm2056 = vcmp.eq.f32.partialorder %v1524, inf
        %v2057 = vsel %vm2056, %v1524, %v2055
        %vm2058 = vcmp.eq.f32.partialorder %v1524, 0.0
        %v2059 = vand.u32 %v1524, 2147483648
        %v2060 = vsel %vm2058, %v2059, %v2057
        %v2061 = vrsqrt.pop %v1533
        %v2062 = vmul.f32 %v1533, %v2061
        %vm2063 = vcmp.eq.f32.partialorder %v1533, inf
        %v2064 = vsel %vm2063, %v1533, %v2062
        %vm2065 = vcmp.eq.f32.partialorder %v1533, 0.0
        %v2066 = vand.u32 %v1533, 2147483648
        %v2067 = vsel %vm2065, %v2066, %v2064
        %v2068 = vrsqrt.pop %v1542
        %v2069 = vmul.f32 %v1542, %v2068
        %vm2070 = vcmp.eq.f32.partialorder %v1542, inf
        %v2071 = vsel %vm2070, %v1542, %v2069
        %vm2072 = vcmp.eq.f32.partialorder %v1542, 0.0
        %v2073 = vand.u32 %v1542, 2147483648
        %v2074 = vsel %vm2072, %v2073, %v2071
        %v2075 = vrsqrt.pop %v1551
        %v2076 = vmul.f32 %v1551, %v2075
        %vm2077 = vcmp.eq.f32.partialorder %v1551, inf
        %v2078 = vsel %vm2077, %v1551, %v2076
        %vm2079 = vcmp.eq.f32.partialorder %v1551, 0.0
        %v2080 = vand.u32 %v1551, 2147483648
        %v2081 = vsel %vm2079, %v2080, %v2078
        %v2082 = vrsqrt.pop %v1560
        %v2083 = vmul.f32 %v1560, %v2082
        %vm2084 = vcmp.eq.f32.partialorder %v1560, inf
        %v2085 = vsel %vm2084, %v1560, %v2083
        %vm2086 = vcmp.eq.f32.partialorder %v1560, 0.0
        %v2087 = vand.u32 %v1560, 2147483648
        %v2088 = vsel %vm2086, %v2087, %v2085
        %v2089 = vrsqrt.pop %v1569
        %v2090 = vmul.f32 %v1569, %v2089
        %vm2091 = vcmp.eq.f32.partialorder %v1569, inf
        %v2092 = vsel %vm2091, %v1569, %v2090
        %vm2093 = vcmp.eq.f32.partialorder %v1569, 0.0
        %v2094 = vand.u32 %v1569, 2147483648
        %v2095 = vsel %vm2093, %v2094, %v2092
        %v2096 = vrsqrt.pop %v1578
        %v2097 = vmul.f32 %v1578, %v2096
        %vm2098 = vcmp.eq.f32.partialorder %v1578, inf
        %v2099 = vsel %vm2098, %v1578, %v2097
        %vm2100 = vcmp.eq.f32.partialorder %v1578, 0.0
        %v2101 = vand.u32 %v1578, 2147483648
        %v2102 = vsel %vm2100, %v2101, %v2099
        %v2103 = vrsqrt.pop %v1587
        %v2104 = vmul.f32 %v1587, %v2103
        %vm2105 = vcmp.eq.f32.partialorder %v1587, inf
        %v2106 = vsel %vm2105, %v1587, %v2104
        %vm2107 = vcmp.eq.f32.partialorder %v1587, 0.0
        %v2108 = vand.u32 %v1587, 2147483648
        %v2109 = vsel %vm2107, %v2108, %v2106
        %v2110 = vrsqrt.pop %v1596
        %v2111 = vmul.f32 %v1596, %v2110
        %vm2112 = vcmp.eq.f32.partialorder %v1596, inf
        %v2113 = vsel %vm2112, %v1596, %v2111
        %vm2114 = vcmp.eq.f32.partialorder %v1596, 0.0
        %v2115 = vand.u32 %v1596, 2147483648
        %v2116 = vsel %vm2114, %v2115, %v2113
        %v2117 = vrsqrt.pop %v1605
        %v2118 = vmul.f32 %v1605, %v2117
        %vm2119 = vcmp.eq.f32.partialorder %v1605, inf
        %v2120 = vsel %vm2119, %v1605, %v2118
        %vm2121 = vcmp.eq.f32.partialorder %v1605, 0.0
        %v2122 = vand.u32 %v1605, 2147483648
        %v2123 = vsel %vm2121, %v2122, %v2120
        %v2124 = vrsqrt.pop %v1614
        %v2125 = vmul.f32 %v1614, %v2124
        %vm2126 = vcmp.eq.f32.partialorder %v1614, inf
        %v2127 = vsel %vm2126, %v1614, %v2125
        %vm2128 = vcmp.eq.f32.partialorder %v1614, 0.0
        %v2129 = vand.u32 %v1614, 2147483648
        %v2130 = vsel %vm2128, %v2129, %v2127
        %v2131 = vrsqrt.pop %v1623
        %v2132 = vmul.f32 %v1623, %v2131
        %vm2133 = vcmp.eq.f32.partialorder %v1623, inf
        %v2134 = vsel %vm2133, %v1623, %v2132
        %vm2135 = vcmp.eq.f32.partialorder %v1623, 0.0
        %v2136 = vand.u32 %v1623, 2147483648
        %v2137 = vsel %vm2135, %v2136, %v2134
        %v2138 = vrsqrt.pop %v1632
        %v2139 = vmul.f32 %v1632, %v2138
        %vm2140 = vcmp.eq.f32.partialorder %v1632, inf
        %v2141 = vsel %vm2140, %v1632, %v2139
        %vm2142 = vcmp.eq.f32.partialorder %v1632, 0.0
        %v2143 = vand.u32 %v1632, 2147483648
        %v2144 = vsel %vm2142, %v2143, %v2141
        %v2145 = vrsqrt.pop %v1641
        %v2146 = vmul.f32 %v1641, %v2145
        %vm2147 = vcmp.eq.f32.partialorder %v1641, inf
        %v2148 = vsel %vm2147, %v1641, %v2146
        %vm2149 = vcmp.eq.f32.partialorder %v1641, 0.0
        %v2150 = vand.u32 %v1641, 2147483648
        %v2151 = vsel %vm2149, %v2150, %v2148
        %v2152 = vrsqrt.pop %v1650
        %v2153 = vmul.f32 %v1650, %v2152
        %vm2154 = vcmp.eq.f32.partialorder %v1650, inf
        %v2155 = vsel %vm2154, %v1650, %v2153
        %vm2156 = vcmp.eq.f32.partialorder %v1650, 0.0
        %v2157 = vand.u32 %v1650, 2147483648
        %v2158 = vsel %vm2156, %v2157, %v2155
        %v2159 = vrsqrt.pop %v1659
        %v2160 = vmul.f32 %v1659, %v2159
        %vm2161 = vcmp.eq.f32.partialorder %v1659, inf
        %v2162 = vsel %vm2161, %v1659, %v2160
        %vm2163 = vcmp.eq.f32.partialorder %v1659, 0.0
        %v2164 = vand.u32 %v1659, 2147483648
        %v2165 = vsel %vm2163, %v2164, %v2162
        %v2166 = vrsqrt.pop %v1668
        %v2167 = vmul.f32 %v1668, %v2166
        %vm2168 = vcmp.eq.f32.partialorder %v1668, inf
        %v2169 = vsel %vm2168, %v1668, %v2167
        %vm2170 = vcmp.eq.f32.partialorder %v1668, 0.0
        %v2171 = vand.u32 %v1668, 2147483648
        %v2172 = vsel %vm2170, %v2171, %v2169
        %v2173 = vrsqrt.pop %v1677
        %v2174 = vmul.f32 %v1677, %v2173
        %vm2175 = vcmp.eq.f32.partialorder %v1677, inf
        %v2176 = vsel %vm2175, %v1677, %v2174
        %vm2177 = vcmp.eq.f32.partialorder %v1677, 0.0
        %v2178 = vand.u32 %v1677, 2147483648
        %v2179 = vsel %vm2177, %v2178, %v2176
        %v2180 = vrsqrt.pop %v1686
        %v2181 = vmul.f32 %v1686, %v2180
        %vm2182 = vcmp.eq.f32.partialorder %v1686, inf
        %v2183 = vsel %vm2182, %v1686, %v2181
        %vm2184 = vcmp.eq.f32.partialorder %v1686, 0.0
        %v2185 = vand.u32 %v1686, 2147483648
        %v2186 = vsel %vm2184, %v2185, %v2183
        %v2187 = vrsqrt.pop %v1695
        %v2188 = vmul.f32 %v1695, %v2187
        %vm2189 = vcmp.eq.f32.partialorder %v1695, inf
        %v2190 = vsel %vm2189, %v1695, %v2188
        %vm2191 = vcmp.eq.f32.partialorder %v1695, 0.0
        %v2192 = vand.u32 %v1695, 2147483648
        %v2193 = vsel %vm2191, %v2192, %v2190
        %v2194 = vrsqrt.pop %v1704
        %v2195 = vmul.f32 %v1704, %v2194
        %vm2196 = vcmp.eq.f32.partialorder %v1704, inf
        %v2197 = vsel %vm2196, %v1704, %v2195
        %vm2198 = vcmp.eq.f32.partialorder %v1704, 0.0
        %v2199 = vand.u32 %v1704, 2147483648
        %v2200 = vsel %vm2198, %v2199, %v2197
        %v2201 = vrsqrt.pop %v1713
        %v2202 = vmul.f32 %v1713, %v2201
        %vm2203 = vcmp.eq.f32.partialorder %v1713, inf
        %v2204 = vsel %vm2203, %v1713, %v2202
        %vm2205 = vcmp.eq.f32.partialorder %v1713, 0.0
        %v2206 = vand.u32 %v1713, 2147483648
        %v2207 = vsel %vm2205, %v2206, %v2204
        %v2208 = vrsqrt.pop %v1722
        %v2209 = vmul.f32 %v1722, %v2208
        %vm2210 = vcmp.eq.f32.partialorder %v1722, inf
        %v2211 = vsel %vm2210, %v1722, %v2209
        %vm2212 = vcmp.eq.f32.partialorder %v1722, 0.0
        %v2213 = vand.u32 %v1722, 2147483648
        %v2214 = vsel %vm2212, %v2213, %v2211
        %v2215 = vrsqrt.pop %v1731
        %v2216 = vmul.f32 %v1731, %v2215
        %vm2217 = vcmp.eq.f32.partialorder %v1731, inf
        %v2218 = vsel %vm2217, %v1731, %v2216
        %vm2219 = vcmp.eq.f32.partialorder %v1731, 0.0
        %v2220 = vand.u32 %v1731, 2147483648
        %v2221 = vsel %vm2219, %v2220, %v2218
        %v2222 = vrsqrt.pop %v1740
        %v2223 = vmul.f32 %v1740, %v2222
        %vm2224 = vcmp.eq.f32.partialorder %v1740, inf
        %v2225 = vsel %vm2224, %v1740, %v2223
        %vm2226 = vcmp.eq.f32.partialorder %v1740, 0.0
        %v2227 = vand.u32 %v1740, 2147483648
        %v2228 = vsel %vm2226, %v2227, %v2225
        %v2229 = vrsqrt.pop %v1749
        %v2230 = vmul.f32 %v1749, %v2229
        %vm2231 = vcmp.eq.f32.partialorder %v1749, inf
        %v2232 = vsel %vm2231, %v1749, %v2230
        %vm2233 = vcmp.eq.f32.partialorder %v1749, 0.0
        %v2234 = vand.u32 %v1749, 2147483648
        %v2235 = vsel %vm2233, %v2234, %v2232
        %v2236 = vrsqrt.pop %v1758
        %v2237 = vmul.f32 %v1758, %v2236
        %vm2238 = vcmp.eq.f32.partialorder %v1758, inf
        %v2239 = vsel %vm2238, %v1758, %v2237
        %vm2240 = vcmp.eq.f32.partialorder %v1758, 0.0
        %v2241 = vand.u32 %v1758, 2147483648
        %v2242 = vsel %vm2240, %v2241, %v2239
        %v2243 = vrsqrt.pop %v1767
        %v2244 = vmul.f32 %v1767, %v2243
        %vm2245 = vcmp.eq.f32.partialorder %v1767, inf
        %v2246 = vsel %vm2245, %v1767, %v2244
        %vm2247 = vcmp.eq.f32.partialorder %v1767, 0.0
        %v2248 = vand.u32 %v1767, 2147483648
        %v2249 = vsel %vm2247, %v2248, %v2246
        %v2250 = vrsqrt.pop %v1776
        %v2251 = vmul.f32 %v1776, %v2250
        %vm2252 = vcmp.eq.f32.partialorder %v1776, inf
        %v2253 = vsel %vm2252, %v1776, %v2251
        %vm2254 = vcmp.eq.f32.partialorder %v1776, 0.0
        %v2255 = vand.u32 %v1776, 2147483648
        %v2256 = vsel %vm2254, %v2255, %v2253
        %v2257 = vrsqrt.pop %v1785
        %v2258 = vmul.f32 %v1785, %v2257
        %vm2259 = vcmp.eq.f32.partialorder %v1785, inf
        %v2260 = vsel %vm2259, %v1785, %v2258
        %vm2261 = vcmp.eq.f32.partialorder %v1785, 0.0
        %v2262 = vand.u32 %v1785, 2147483648
        %v2263 = vsel %vm2261, %v2262, %v2260
        %v2264 = vrsqrt.pop %v1794
        %v2265 = vmul.f32 %v1794, %v2264
        %vm2266 = vcmp.eq.f32.partialorder %v1794, inf
        %v2267 = vsel %vm2266, %v1794, %v2265
        %vm2268 = vcmp.eq.f32.partialorder %v1794, 0.0
        %v2269 = vand.u32 %v1794, 2147483648
        %v2270 = vsel %vm2268, %v2269, %v2267
        %v2271 = vrsqrt.pop %v1803
        %v2272 = vmul.f32 %v1803, %v2271
        %vm2273 = vcmp.eq.f32.partialorder %v1803, inf
        %v2274 = vsel %vm2273, %v1803, %v2272
        %vm2275 = vcmp.eq.f32.partialorder %v1803, 0.0
        %v2276 = vand.u32 %v1803, 2147483648
        %v2277 = vsel %vm2275, %v2276, %v2274
        %v2278 = vrsqrt.pop %v1812
        %v2279 = vmul.f32 %v1812, %v2278
        %vm2280 = vcmp.eq.f32.partialorder %v1812, inf
        %v2281 = vsel %vm2280, %v1812, %v2279
        %vm2282 = vcmp.eq.f32.partialorder %v1812, 0.0
        %v2283 = vand.u32 %v1812, 2147483648
        %v2284 = vsel %vm2282, %v2283, %v2281
        %v2285 = vrsqrt.pop %v1821
        %v2286 = vmul.f32 %v1821, %v2285
        %vm2287 = vcmp.eq.f32.partialorder %v1821, inf
        %v2288 = vsel %vm2287, %v1821, %v2286
        %vm2289 = vcmp.eq.f32.partialorder %v1821, 0.0
        %v2290 = vand.u32 %v1821, 2147483648
        %v2291 = vsel %vm2289, %v2290, %v2288
        %v2292 = vrsqrt.pop %v1830
        %v2293 = vmul.f32 %v1830, %v2292
        %vm2294 = vcmp.eq.f32.partialorder %v1830, inf
        %v2295 = vsel %vm2294, %v1830, %v2293
        %vm2296 = vcmp.eq.f32.partialorder %v1830, 0.0
        %v2297 = vand.u32 %v1830, 2147483648
        %v2298 = vsel %vm2296, %v2297, %v2295
        %v2299 = vrsqrt.pop %v1839
        %v2300 = vmul.f32 %v1839, %v2299
        %vm2301 = vcmp.eq.f32.partialorder %v1839, inf
        %v2302 = vsel %vm2301, %v1839, %v2300
        %vm2303 = vcmp.eq.f32.partialorder %v1839, 0.0
        %v2304 = vand.u32 %v1839, 2147483648
        %v2305 = vsel %vm2303, %v2304, %v2302
        %v2306 = vrsqrt.pop %v1848
        %v2307 = vmul.f32 %v1848, %v2306
        %vm2308 = vcmp.eq.f32.partialorder %v1848, inf
        %v2309 = vsel %vm2308, %v1848, %v2307
        %vm2310 = vcmp.eq.f32.partialorder %v1848, 0.0
        %v2311 = vand.u32 %v1848, 2147483648
        %v2312 = vsel %vm2310, %v2311, %v2309
        %v2313 = vrsqrt.pop %v1857
        %v2314 = vmul.f32 %v1857, %v2313
        %vm2315 = vcmp.eq.f32.partialorder %v1857, inf
        %v2316 = vsel %vm2315, %v1857, %v2314
        %vm2317 = vcmp.eq.f32.partialorder %v1857, 0.0
        %v2318 = vand.u32 %v1857, 2147483648
        %v2319 = vsel %vm2317, %v2318, %v2316
        %v2320 = vrsqrt.pop %v1866
        %v2321 = vmul.f32 %v1866, %v2320
        %vm2322 = vcmp.eq.f32.partialorder %v1866, inf
        %v2323 = vsel %vm2322, %v1866, %v2321
        %vm2324 = vcmp.eq.f32.partialorder %v1866, 0.0
        %v2325 = vand.u32 %v1866, 2147483648
        %v2326 = vsel %vm2324, %v2325, %v2323
        %v2327 = vrsqrt.pop %v1875
        %v2328 = vmul.f32 %v1875, %v2327
        %vm2329 = vcmp.eq.f32.partialorder %v1875, inf
        %v2330 = vsel %vm2329, %v1875, %v2328
        %vm2331 = vcmp.eq.f32.partialorder %v1875, 0.0
        %v2332 = vand.u32 %v1875, 2147483648
        %v2333 = vsel %vm2331, %v2332, %v2330
        %v2334 = vrsqrt.pop %v1884
        %v2335 = vmul.f32 %v1884, %v2334
        %vm2336 = vcmp.eq.f32.partialorder %v1884, inf
        %v2337 = vsel %vm2336, %v1884, %v2335
        %vm2338 = vcmp.eq.f32.partialorder %v1884, 0.0
        %v2339 = vand.u32 %v1884, 2147483648
        %v2340 = vsel %vm2338, %v2339, %v2337
        %v2341 = vrsqrt.pop %v1893
        %v2342 = vmul.f32 %v1893, %v2341
        %vm2343 = vcmp.eq.f32.partialorder %v1893, inf
        %v2344 = vsel %vm2343, %v1893, %v2342
        %vm2345 = vcmp.eq.f32.partialorder %v1893, 0.0
        %v2346 = vand.u32 %v1893, 2147483648
        %v2347 = vsel %vm2345, %v2346, %v2344
        %v2348 = vrsqrt.pop %v1902
        %v2349 = vmul.f32 %v1902, %v2348
        %vm2350 = vcmp.eq.f32.partialorder %v1902, inf
        %v2351 = vsel %vm2350, %v1902, %v2349
        %vm2352 = vcmp.eq.f32.partialorder %v1902, 0.0
        %v2353 = vand.u32 %v1902, 2147483648
        %v2354 = vsel %vm2352, %v2353, %v2351
        %v2355 = vrsqrt.pop %v1911
        %v2356 = vmul.f32 %v1911, %v2355
        %vm2357 = vcmp.eq.f32.partialorder %v1911, inf
        %v2358 = vsel %vm2357, %v1911, %v2356
        %vm2359 = vcmp.eq.f32.partialorder %v1911, 0.0
        %v2360 = vand.u32 %v1911, 2147483648
        %v2361 = vsel %vm2359, %v2360, %v2358
        %v2362 = vrsqrt.pop %v1920
        %v2363 = vmul.f32 %v1920, %v2362
        %vm2364 = vcmp.eq.f32.partialorder %v1920, inf
        %v2365 = vsel %vm2364, %v1920, %v2363
        %vm2366 = vcmp.eq.f32.partialorder %v1920, 0.0
        %v2367 = vand.u32 %v1920, 2147483648
        %v2368 = vsel %vm2366, %v2367, %v2365
        %v2369 = vld [vmem:[%s274] sm:$0xff]
        %v2370 = vld [vmem:[%s274 + $0x8] sm:$0xff]
        %v2371 = vld [vmem:[%s274 + $0x10] sm:$0xff]
        %v2372 = vld [vmem:[%s274 + $0x18] sm:$0xff]
        %v2373 = vld [vmem:[%s274 + $0x20] sm:$0xff]
        %v2374 = vld [vmem:[%s274 + $0x28] sm:$0xff]
        %v2375 = vld [vmem:[%s274 + $0x30] sm:$0xff]
        %v2376 = vld [vmem:[%s274 + $0x38] sm:$0xff]
        %v2385 = vrot.slane %v2369, 1
        %v2386 = vrot.slane %v2370, 1
        %v2387 = vrot.slane %v2371, 1
        %v2388 = vrot.slane %v2372, 1
        %v2389 = vrot.slane %v2373, 1
        %v2390 = vrot.slane %v2374, 1
        %v2391 = vrot.slane %v2375, 1
        %v2392 = vrot.slane %v2376, 1
        %v2393 = vrot.slane %v2369, 2
        %v2394 = vrot.slane %v2370, 2
        %v2395 = vrot.slane %v2371, 2
        %v2396 = vrot.slane %v2372, 2
        %v2397 = vrot.slane %v2373, 2
        %v2398 = vrot.slane %v2374, 2
        %v2399 = vrot.slane %v2375, 2
        %v2400 = vrot.slane %v2376, 2
        %v2401 = vrot.slane %v2369, 3
        %v2402 = vrot.slane %v2370, 3
        %v2403 = vrot.slane %v2371, 3
        %v2404 = vrot.slane %v2372, 3
        %v2405 = vrot.slane %v2373, 3
        %v2406 = vrot.slane %v2374, 3
        %v2407 = vrot.slane %v2375, 3
        %v2408 = vrot.slane %v2376, 3
        %v2409 = vrot.slane %v2369, 4
        %v2410 = vrot.slane %v2370, 4
        %v2411 = vrot.slane %v2371, 4
        %v2412 = vrot.slane %v2372, 4
        %v2413 = vrot.slane %v2373, 4
        %v2414 = vrot.slane %v2374, 4
        %v2415 = vrot.slane %v2375, 4
        %v2416 = vrot.slane %v2376, 4
        %v2417 = vrot.slane %v2369, 5
        %v2418 = vrot.slane %v2370, 5
        %v2419 = vrot.slane %v2371, 5
        %v2420 = vrot.slane %v2372, 5
        %v2421 = vrot.slane %v2373, 5
        %v2422 = vrot.slane %v2374, 5
        %v2423 = vrot.slane %v2375, 5
        %v2424 = vrot.slane %v2376, 5
        %v2425 = vrot.slane %v2369, 6
        %v2426 = vrot.slane %v2370, 6
        %v2427 = vrot.slane %v2371, 6
        %v2428 = vrot.slane %v2372, 6
        %v2429 = vrot.slane %v2373, 6
        %v2430 = vrot.slane %v2374, 6
        %v2431 = vrot.slane %v2375, 6
        %v2432 = vrot.slane %v2376, 6
        %v2433 = vrot.slane %v2369, 7
        %v2434 = vrot.slane %v2370, 7
        %v2435 = vrot.slane %v2371, 7
        %v2436 = vrot.slane %v2372, 7
        %v2437 = vrot.slane %v2373, 7
        %v2438 = vrot.slane %v2374, 7
        %v2439 = vrot.slane %v2375, 7
        %v2440 = vrot.slane %v2376, 7
        %v2505 = vsub.f32 %v1927, %v2369
        %v2506 = vsub.f32 %v1934, %v2370
        %v2507 = vsub.f32 %v1941, %v2371
        %v2508 = vsub.f32 %v1948, %v2372
        %v2509 = vsub.f32 %v1955, %v2373
        %v2510 = vsub.f32 %v1962, %v2374
        %v2511 = vsub.f32 %v1969, %v2375
        %v2512 = vsub.f32 %v1976, %v2376
        %v2513 = vsub.f32 %v1983, %v2385
        %v2514 = vsub.f32 %v1990, %v2386
        %v2515 = vsub.f32 %v1997, %v2387
        %v2516 = vsub.f32 %v2004, %v2388
        %v2517 = vsub.f32 %v2011, %v2389
        %v2518 = vsub.f32 %v2018, %v2390
        %v2519 = vsub.f32 %v2025, %v2391
        %v2520 = vsub.f32 %v2032, %v2392
        %v2521 = vsub.f32 %v2039, %v2393
        %v2522 = vsub.f32 %v2046, %v2394
        %v2523 = vsub.f32 %v2053, %v2395
        %v2524 = vsub.f32 %v2060, %v2396
        %v2525 = vsub.f32 %v2067, %v2397
        %v2526 = vsub.f32 %v2074, %v2398
        %v2527 = vsub.f32 %v2081, %v2399
        %v2528 = vsub.f32 %v2088, %v2400
        %v2529 = vsub.f32 %v2095, %v2401
        %v2530 = vsub.f32 %v2102, %v2402
        %v2531 = vsub.f32 %v2109, %v2403
        %v2532 = vsub.f32 %v2116, %v2404
        %v2533 = vsub.f32 %v2123, %v2405
        %v2534 = vsub.f32 %v2130, %v2406
        %v2535 = vsub.f32 %v2137, %v2407
        %v2536 = vsub.f32 %v2144, %v2408
        %v2537 = vsub.f32 %v2151, %v2409
        %v2538 = vsub.f32 %v2158, %v2410
        %v2539 = vsub.f32 %v2165, %v2411
        %v2540 = vsub.f32 %v2172, %v2412
        %v2541 = vsub.f32 %v2179, %v2413
        %v2542 = vsub.f32 %v2186, %v2414
        %v2543 = vsub.f32 %v2193, %v2415
        %v2544 = vsub.f32 %v2200, %v2416
        %v2545 = vsub.f32 %v2207, %v2417
        %v2546 = vsub.f32 %v2214, %v2418
        %v2547 = vsub.f32 %v2221, %v2419
        %v2548 = vsub.f32 %v2228, %v2420
        %v2549 = vsub.f32 %v2235, %v2421
        %v2550 = vsub.f32 %v2242, %v2422
        %v2551 = vsub.f32 %v2249, %v2423
        %v2552 = vsub.f32 %v2256, %v2424
        %v2553 = vsub.f32 %v2263, %v2425
        %v2554 = vsub.f32 %v2270, %v2426
        %v2555 = vsub.f32 %v2277, %v2427
        %v2556 = vsub.f32 %v2284, %v2428
        %v2557 = vsub.f32 %v2291, %v2429
        %v2558 = vsub.f32 %v2298, %v2430
        %v2559 = vsub.f32 %v2305, %v2431
        %v2560 = vsub.f32 %v2312, %v2432
        %v2561 = vsub.f32 %v2319, %v2433
        %v2562 = vsub.f32 %v2326, %v2434
        %v2563 = vsub.f32 %v2333, %v2435
        %v2564 = vsub.f32 %v2340, %v2436
        %v2565 = vsub.f32 %v2347, %v2437
        %v2566 = vsub.f32 %v2354, %v2438
        %v2567 = vsub.f32 %v2361, %v2439
        %v2568 = vsub.f32 %v2368, %v2440
        %v2569 = vmul.f32 %v2505, %v2505
        %v2570 = vmul.f32 %v2506, %v2506
        %v2571 = vmul.f32 %v2507, %v2507
        %v2572 = vmul.f32 %v2508, %v2508
        %v2573 = vmul.f32 %v2509, %v2509
        %v2574 = vmul.f32 %v2510, %v2510
        %v2575 = vmul.f32 %v2511, %v2511
        %v2576 = vmul.f32 %v2512, %v2512
        %v2577 = vmul.f32 %v2513, %v2513
        %v2578 = vmul.f32 %v2514, %v2514
        %v2579 = vmul.f32 %v2515, %v2515
        %v2580 = vmul.f32 %v2516, %v2516
        %v2581 = vmul.f32 %v2517, %v2517
        %v2582 = vmul.f32 %v2518, %v2518
        %v2583 = vmul.f32 %v2519, %v2519
        %v2584 = vmul.f32 %v2520, %v2520
        %v2585 = vmul.f32 %v2521, %v2521
        %v2586 = vmul.f32 %v2522, %v2522
        %v2587 = vmul.f32 %v2523, %v2523
        %v2588 = vmul.f32 %v2524, %v2524
        %v2589 = vmul.f32 %v2525, %v2525
        %v2590 = vmul.f32 %v2526, %v2526
        %v2591 = vmul.f32 %v2527, %v2527
        %v2592 = vmul.f32 %v2528, %v2528
        %v2593 = vmul.f32 %v2529, %v2529
        %v2594 = vmul.f32 %v2530, %v2530
        %v2595 = vmul.f32 %v2531, %v2531
        %v2596 = vmul.f32 %v2532, %v2532
        %v2597 = vmul.f32 %v2533, %v2533
        %v2598 = vmul.f32 %v2534, %v2534
        %v2599 = vmul.f32 %v2535, %v2535
        %v2600 = vmul.f32 %v2536, %v2536
        %v2601 = vmul.f32 %v2537, %v2537
        %v2602 = vmul.f32 %v2538, %v2538
        %v2603 = vmul.f32 %v2539, %v2539
        %v2604 = vmul.f32 %v2540, %v2540
        %v2605 = vmul.f32 %v2541, %v2541
        %v2606 = vmul.f32 %v2542, %v2542
        %v2607 = vmul.f32 %v2543, %v2543
        %v2608 = vmul.f32 %v2544, %v2544
        %v2609 = vmul.f32 %v2545, %v2545
        %v2610 = vmul.f32 %v2546, %v2546
        %v2611 = vmul.f32 %v2547, %v2547
        %v2612 = vmul.f32 %v2548, %v2548
        %v2613 = vmul.f32 %v2549, %v2549
        %v2614 = vmul.f32 %v2550, %v2550
        %v2615 = vmul.f32 %v2551, %v2551
        %v2616 = vmul.f32 %v2552, %v2552
        %v2617 = vmul.f32 %v2553, %v2553
        %v2618 = vmul.f32 %v2554, %v2554
        %v2619 = vmul.f32 %v2555, %v2555
        %v2620 = vmul.f32 %v2556, %v2556
        %v2621 = vmul.f32 %v2557, %v2557
        %v2622 = vmul.f32 %v2558, %v2558
        %v2623 = vmul.f32 %v2559, %v2559
        %v2624 = vmul.f32 %v2560, %v2560
        %v2625 = vmul.f32 %v2561, %v2561
        %v2626 = vmul.f32 %v2562, %v2562
        %v2627 = vmul.f32 %v2563, %v2563
        %v2628 = vmul.f32 %v2564, %v2564
        %v2629 = vmul.f32 %v2565, %v2565
        %v2630 = vmul.f32 %v2566, %v2566
        %v2631 = vmul.f32 %v2567, %v2567
        %v2632 = vmul.f32 %v2568, %v2568
        %v2633 = vadd.f32 %v2569, %v2570
        %v2634 = vadd.f32 %v2577, %v2578
        %v2635 = vadd.f32 %v2585, %v2586
        %v2636 = vadd.f32 %v2593, %v2594
        %v2637 = vadd.f32 %v2601, %v2602
        %v2638 = vadd.f32 %v2609, %v2610
        %v2639 = vadd.f32 %v2617, %v2618
        %v2640 = vadd.f32 %v2625, %v2626
        %v2641 = vadd.f32 %v2633, %v2571
        %v2642 = vadd.f32 %v2634, %v2579
        %v2643 = vadd.f32 %v2635, %v2587
        %v2644 = vadd.f32 %v2636, %v2595
        %v2645 = vadd.f32 %v2637, %v2603
        %v2646 = vadd.f32 %v2638, %v2611
        %v2647 = vadd.f32 %v2639, %v2619
        %v2648 = vadd.f32 %v2640, %v2627
        %v2649 = vadd.f32 %v2641, %v2572
        %v2650 = vadd.f32 %v2642, %v2580
        %v2651 = vadd.f32 %v2643, %v2588
        %v2652 = vadd.f32 %v2644, %v2596
        %v2653 = vadd.f32 %v2645, %v2604
        %v2654 = vadd.f32 %v2646, %v2612
        %v2655 = vadd.f32 %v2647, %v2620
        %v2656 = vadd.f32 %v2648, %v2628
        %v2657 = vadd.f32 %v2649, %v2573
        %v2658 = vadd.f32 %v2650, %v2581
        %v2659 = vadd.f32 %v2651, %v2589
        %v2660 = vadd.f32 %v2652, %v2597
        %v2661 = vadd.f32 %v2653, %v2605
        %v2662 = vadd.f32 %v2654, %v2613
        %v2663 = vadd.f32 %v2655, %v2621
        %v2664 = vadd.f32 %v2656, %v2629
        %v2665 = vadd.f32 %v2657, %v2574
        %v2666 = vadd.f32 %v2658, %v2582
        %v2667 = vadd.f32 %v2659, %v2590
        %v2668 = vadd.f32 %v2660, %v2598
        %v2669 = vadd.f32 %v2661, %v2606
        %v2670 = vadd.f32 %v2662, %v2614
        %v2671 = vadd.f32 %v2663, %v2622
        %v2672 = vadd.f32 %v2664, %v2630
        %v2673 = vadd.f32 %v2665, %v2575
        %v2674 = vadd.f32 %v2666, %v2583
        %v2675 = vadd.f32 %v2667, %v2591
        %v2676 = vadd.f32 %v2668, %v2599
        %v2677 = vadd.f32 %v2669, %v2607
        %v2678 = vadd.f32 %v2670, %v2615
        %v2679 = vadd.f32 %v2671, %v2623
        %v2680 = vadd.f32 %v2672, %v2631
        %v2681 = vadd.f32 %v2673, %v2576
        %v2682 = vadd.f32 %v2674, %v2584
        %v2683 = vadd.f32 %v2675, %v2592
        %v2684 = vadd.f32 %v2676, %v2600
        %v2685 = vadd.f32 %v2677, %v2608
        %v2686 = vadd.f32 %v2678, %v2616
        %v2687 = vadd.f32 %v2679, %v2624
        %v2688 = vadd.f32 %v2680, %v2632
        %v2689 = vld [vmem:[%s306] sm:$0xff]
        %v2698 = vrot.slane %v2682, 7
        %vm2699 = vcmask 1041409
        %v2700 = vsel %vm2699, %v2698, %v2681
        %v2701 = vrot.slane %v2683, 6
        %vm2702 = vcmask 1042434
        %v2703 = vsel %vm2702, %v2701, %v2700
        %v2704 = vrot.slane %v2684, 5
        %vm2705 = vcmask 1043459
        %v2706 = vsel %vm2705, %v2704, %v2703
        %v2707 = vrot.slane %v2685, 4
        %vm2708 = vcmask 1044484
        %v2709 = vsel %vm2708, %v2707, %v2706
        %v2710 = vrot.slane %v2686, 3
        %vm2711 = vcmask 1045509
        %v2712 = vsel %vm2711, %v2710, %v2709
        %v2713 = vrot.slane %v2687, 2
        %vm2714 = vcmask 1046534
        %v2715 = vsel %vm2714, %v2713, %v2712
        %v2716 = vrot.slane %v2688, 1
        %vm2717 = vcmask 1047559
        %v2718 = vsel %vm2717, %v2716, %v2715
        %v2720 = vadd.f32 %v2689, %v2718
        %2721 = vst [vmem:[%s306] sm:$0xff] %v2720
        %s2722 = sand.u32 %s138, 1
        %s2723 = scalar_lea.sflag [#allocation5], %s2722
        %s2724 = sand.u32 %s138, 1
        %s2725 = smul.addr %s2724, 8
        %s2726 = scalar_lea.vmem [#allocation9], %s2725
        // Predicated region
        $region49: #{tpu_custom_call.1} parent=31 // pred_check
          %p2727 = pneg %p148
        $region50: #{tpu_custom_call.1} parent=31 // pred_check_branch
          %2729 = sbr.rel (%p2727) target = $region52
        $region51: #{tpu_custom_call.1} parent=31 // pred_region
          %s2731 = ssub.s32 128, 128
          %2732 = vsyncadd %s2723, %s2731
          %s2733 = smul.addr %s28, 128
          %s2734 = scalar_lea.hbm %s3, %s2733
          %s2736 = sshll.u32 %s2726, 4
          %s2737 = int_to_ptr.vmem [resolvable:$true] %s2736
          %2739 = dma.vmem_to_hbm [thread:$0]  %s2737, 128, %s2734, %s2723
        $region52: #{tpu_custom_call.1} parent=31 // pred_fallthru
          _
      $region32: #{tpu_custom_call.1} parent=5 // pred_fallthru
        _
      %p2740 = scmp.le.s32.totalorder 2, %s18
      // Predicated region
      $region53: #{tpu_custom_call.1} parent=5 // pred_check
        %p2741 = pneg %p2740
      $region54: #{tpu_custom_call.1} parent=5 // pred_check_branch
        %2743 = sbr.rel (%p2741) target = $region56
      $region55: #{tpu_custom_call.1} parent=5 // pred_region
        %s2744 = ssub.s32 %s18, 2
        // Predicated region
        $region57: #{tpu_custom_call.1} parent=55 // pred_check
          %p2745 = pneg %p154
        $region58: #{tpu_custom_call.1} parent=55 // pred_check_branch
          %2747 = sbr.rel (%p2745) target = $region60
        $region59: #{tpu_custom_call.1} parent=55 // pred_region
          %s2748 = sand.u32 %s139, 1
          %s2749 = scalar_lea.sflag [#allocation5], %s2748
          %s2750 = sand.u32 %s139, 1
          %s2751 = smul.addr %s2750, 8
          %s2752 = scalar_lea.vmem [#allocation9], %s2751
          %2753 = dma.done %s2749, 128
        $region60: #{tpu_custom_call.1} parent=55 // pred_fallthru
          _
      $region56: #{tpu_custom_call.1} parent=5 // pred_fallthru
        _
    $region6: #{tpu_custom_call.1} parent=1 // loop_footer
      %s22 = sadd.s32 1, %s18
    $region7: #{tpu_custom_call.1} parent=1 // loop_footer_branch
      %17 = sbr.rel target = $region3
    $region8: #{tpu_custom_call.1} parent=1 // loop_exit
      _
    %2754 = vsyncpa [#allocation4], 1
    %s2755 = scalar_lea.sflag [#allocation4], 1
    %2756 = vsyncpa %s2755, 1
    %2757 = vsyncpa [#allocation7], 1
    %s2758 = scalar_lea.sflag [#allocation7], 1
    %2759 = vsyncpa %s2758, 1
    %2760 = vsyncpa [#allocation5], 1
    %s2761 = scalar_lea.sflag [#allocation5], 1
    %2762 = vsyncpa %s2761, 1

</llo_original>
